<compile_context>
chip_gen: v7x
topology: tpu7x:2x2x1
jax: 0.10.0
libtpu: 0.0.40
codegen_flags: <defaults>
</compile_context>

<pallas_src>
import functools

import numpy as np
import jax
import jax.numpy as jnp
from jax.experimental import pallas as pl
from jax.experimental.pallas import tpu as pltpu


def _next_greater_power_of_2(x: int) -> int:
    return 2 ** (x - 1).bit_length()


def _round_up(x: int, m: int) -> int:
    return ((x + m - 1) // m) * m


# ----------------------------- host-side DFT tables --------------------------


@functools.lru_cache(maxsize=None)
def _dft_tables(n: int, frame_size: int):
    """Fused [cos | -sin] truncated DFT basis (k = 0..n/2-1) + Nyquist weights.

    * Only the first `frame_size` rows of the n-point DFT matrix matter because
      rfft zero-pads (or truncates) the signal to length n.
    * Rows t >= n are zeroed so frames longer than n truncate exactly like
      torch.fft.rfft instead of aliasing through the mod-n reduction.
    * Angles are reduced with integer (t*k) mod n before the trig so the basis
      stays accurate for large frame_size.
    """
    n_half = n // 2
    t = np.arange(frame_size, dtype=np.int64)[:, None]
    k = np.arange(n_half, dtype=np.int64)[None, :]
    tk = (t * k) % n
    ang = 2.0 * np.pi * tk.astype(np.float64) / float(n)
    valid_t = (t < n).astype(np.float64)                       # truncate, don't alias
    cos_mat = np.cos(ang) * valid_t
    sin_mat = -np.sin(ang) * valid_t
    basis = np.concatenate([cos_mat, sin_mat], axis=1).astype(np.float32)

    # Nyquist bin k = n/2:  cos(pi*t) = (-1)^t, sin term identically zero.
    tt = np.arange(frame_size, dtype=np.int64)
    nyqw = (np.where(tt % 2 == 0, 1.0, -1.0) * (tt < n)).astype(np.float32)[None, :]
    return jnp.asarray(basis), jnp.asarray(nyqw)                # (fs, n), (1, fs)


# ------------------------------- in-kernel math -------------------------------


def _atan2(y, x):
    """atan2(y, x) from basic VPU ops (no reliance on a lax.atan2 lowering).

    Octant reduction + two half-angle reductions + short odd series; max error
    ~3e-7 rad.  Matches torch.angle conventions (atan2(0, 0) == 0).
    """
    ax = jnp.abs(x)
    ay = jnp.abs(y)
    hi = jnp.maximum(ax, ay)
    lo = jnp.minimum(ax, ay)
    den = jnp.where(hi > 0.0, hi, 1.0)
    a = lo / den                                   # in [0, 1]
    # two half-angle reductions: atan(a) = 2*atan(a / (1 + sqrt(1 + a^2)))
    a = a / (1.0 + jnp.sqrt(1.0 + a * a))
    a = a / (1.0 + jnp.sqrt(1.0 + a * a))          # now a in [0, tan(pi/16)]
    s = a * a
    r = a * (1.0 + s * (-1.0 / 3.0 + s * (0.2 + s * (-1.0 / 7.0))))
    r = 4.0 * r
    r = jnp.where(ay > ax, 0.5 * np.pi - r, r)
    r = jnp.where(x < 0.0, np.pi - r, r)
    r = jnp.where(y < 0.0, -r, r)
    return r


def _dft_compute(x_ref, basis_ref, nyqw_ref):
    """One lane-dense MXU matmul per row tile + a cheap Nyquist reduction."""
    x = x_ref[...]
    y = jnp.dot(
        x, basis_ref[...],
        preferred_element_type=jnp.float32,
        precision=jax.lax.Precision.HIGHEST,       # f32-faithful (no bf16 demote)
    )
    n_half = basis_ref.shape[1] // 2
    re = y[:, :n_half]
    im = y[:, n_half:]
    nyq = jnp.sum(x * nyqw_ref[...], axis=-1, keepdims=True)   # (tm, 1), imag == 0
    return re, im, nyq


def _dft_kernel(x_ref, basis_ref, nyqw_ref, re_ref, im_ref):
    """Planar real/imag outputs, written at exactly n_freq columns."""
    n_half = basis_ref.shape[1] // 2
    re, im, nyq = _dft_compute(x_ref, basis_ref, nyqw_ref)
    re_ref[:, :n_half] = re
    re_ref[:, n_half:] = nyq
    im_ref[:, :n_half] = im
    im_ref[:, n_half:] = jnp.zeros_like(nyq)


def _dft_phase_kernel(x_ref, basis_ref, nyqw_ref, ph_ref):
    """Fused phase output (torch.angle(rfft(x))) — single n_freq-wide write."""
    n_half = basis_ref.shape[1] // 2
    re, im, nyq = _dft_compute(x_ref, basis_ref, nyqw_ref)
    ph_ref[:, :n_half] = _atan2(im, re)
    # Nyquist bin is purely real: angle is 0 for >= 0, pi for < 0.
    ph_ref[:, n_half:] = jnp.where(nyq < 0.0, jnp.float32(np.pi), jnp.float32(0.0))


# ---------------------------------- wrapper -----------------------------------


@functools.partial(jax.jit, static_argnames=("n", "phase_only", "tm_max"))
def _dft_impl(x, basis, nyqw, *, n, phase_only, tm_max):
    batch, n_frames, n_mics, frame_size = x.shape
    n_half = n // 2
    n_freq = n_half + 1
    m_rows = batch * n_frames * n_mics
    x2d = x.reshape(m_rows, frame_size).astype(jnp.float32)

    # ---- row-tile selection --------------------------------------------------
    # Large tiles amortize the ~0.35us/step grid overhead (the kernel is output-
    # writeback bound), but:
    #   * keep >= 2 grid steps whenever possible so "parallel" shards across
    #     v7x's two TensorCores,
    #   * keep the double-buffered working set inside an explicit VMEM budget
    #     (the basis is grid-invariant, so Pallas DMAs it only once, but it is
    #     still allocated double-buffered and must be budgeted for).
    n_outs = 1 if phase_only else 2
    lanes_in = _round_up(frame_size, 128)
    lanes_out = _round_up(n_freq, 128)
    bytes_basis = 2 * frame_size * (2 * n_half) * 4
    bytes_nyqw = 2 * 8 * lanes_in * 4

    def working_set(tm):
        return (bytes_basis + bytes_nyqw
                + 2 * tm * lanes_in * 4            # x tile, double-buffered
                + 2 * n_outs * tm * lanes_out * 4)  # output tiles, double-buffered

    tm = min(tm_max, _round_up(m_rows, 8))
    if tm >= m_rows:
        tm = m_rows                                 # single block == full array (legal)
    if m_rows > 8:                                  # guarantee >= 2 grid steps (v7x)
        tm = min(tm, _round_up(pl.cdiv(m_rows, 2), 8))
    while tm > 8 and working_set(tm) > 28 * 1024 * 1024:
        tm = _round_up(tm // 2, 8)
    grid = (pl.cdiv(m_rows, tm),)

    vmem_limit = int(min(max(working_set(tm) * 5 // 4, 16 * 1024 * 1024),
                         48 * 1024 * 1024))

    # ---- pallas_call ----------------------------------------------------------
    if phase_only:
        kernel = _dft_phase_kernel
        out_shape = jax.ShapeDtypeStruct((m_rows, n_freq), jnp.float32)
        out_specs = pl.BlockSpec((tm, n_freq), lambda i: (i, 0))
    else:
        kernel = _dft_kernel
        out_shape = (jax.ShapeDtypeStruct((m_rows, n_freq), jnp.float32),
                     jax.ShapeDtypeStruct((m_rows, n_freq), jnp.float32))
        out_specs = (pl.BlockSpec((tm, n_freq), lambda i: (i, 0)),
                     pl.BlockSpec((tm, n_freq), lambda i: (i, 0)))

    cost = pl.CostEstimate(
        flops=2 * m_rows * frame_size * (2 * n_half) + 3 * m_rows * frame_size,
        transcendentals=0,
        bytes_accessed=4 * (m_rows * frame_size + frame_size * 2 * n_half
                            + frame_size + n_outs * m_rows * n_freq),
    )

    result = pl.pallas_call(
        kernel,
        out_shape=out_shape,
        grid=grid,
        in_specs=[
            pl.BlockSpec((tm, frame_size), lambda i: (i, 0)),
            pl.BlockSpec((frame_size, 2 * n_half), lambda i: (0, 0)),
            pl.BlockSpec((1, frame_size), lambda i: (0, 0)),
        ],
        out_specs=out_specs,
        compiler_params=pltpu.CompilerParams(
            dimension_semantics=("parallel",),
            vmem_limit_bytes=vmem_limit),
        cost_estimate=cost,
    )(x2d, basis, nyqw)

    def to4d(a):
        return a.reshape(batch, n_frames, n_mics, n_freq)  # free (splits lead dim)

    if phase_only:
        return to4d(result)
    re, im = result
    # TODO(synk): if the consumer accepts planar (re, im), return them directly
    # and skip this extra complex64 materialization pass.
    return jax.lax.complex(to4d(re), to4d(im))


def dft_forward(x, n_dft: int = 512, phase_only: bool = False, tm: int = 512):
    """JAX/Pallas equivalent of Dft(n_dft, phase_only).forward(x).

    x: float32 (batch, n_frames, n_mics, frame_size).
    Returns complex64 of shape (..., n//2 + 1) with n = next_pow2(2*n_dft), or
    float32 phase of the same shape if phase_only=True.
    """
    n = _next_greater_power_of_2(n_dft * 2)
    frame_size = x.shape[-1]
    if frame_size > n:
        x = x[..., :n]                              # rfft truncates to n samples
        frame_size = n
    basis, nyqw = _dft_tables(n, frame_size)
    return _dft_impl(x, basis, nyqw, n=n, phase_only=phase_only, tm_max=tm)


# ------------------------------------ demo ------------------------------------

if __name__ == "__main__":
    key = jax.random.PRNGKey(0)
    batch, n_frames, n_mics, frame_size = 2, 4, 3, 16
    x = jax.random.normal(key, (batch, n_frames, n_mics, frame_size),
                          dtype=jnp.float32)

    # Default module config: n_dft=512 -> internal N=1024, 513 rfft bins.
    out = jax.block_until_ready(dft_forward(x, n_dft=512, phase_only=False))
    assert out.shape == (batch, n_frames, n_mics, 513), out.shape
    assert out.dtype == jnp.complex64, out.dtype

    # Cross-check against the reference FFT (same semantics as torch.fft.rfft).
    ref = jnp.fft.rfft(x, n=1024, axis=-1).astype(jnp.complex64)
    assert jnp.allclose(out, ref, atol=2e-3, rtol=2e-3), "mismatch vs jnp.fft.rfft"

    # phase_only path (torch.angle): wrap-safe comparison against atan2 of the
    # complex-path outputs (avoids +/-pi wrap false alarms).
    ph = jax.block_until_ready(dft_forward(x, n_dft=512, phase_only=True))
    assert ph.shape == (batch, n_frames, n_mics, 513), ph.shape
    assert ph.dtype == jnp.float32, ph.dtype
    ref_ph = jnp.arctan2(out.imag, out.real)
    err = jnp.abs(jnp.exp(1j * ph) - jnp.exp(1j * ref_ph))
    assert float(jnp.max(err)) < 1e-3, float(jnp.max(err))

    print("KERNEL_OK")
</pallas_src>

<mosaic_0001>
module attributes {stable_mosaic.version = 11 : i64} {
  func.func @_dft_kernel(%arg0: i32, %arg1: memref<16x16xf32, #tpu.memory_space<vmem>>, %arg2: memref<16x1024xf32, #tpu.memory_space<vmem>>, %arg3: memref<1x16xf32, #tpu.memory_space<vmem>>, %arg4: memref<16x513xf32, #tpu.memory_space<vmem>>, %arg5: memref<16x513xf32, #tpu.memory_space<vmem>>) attributes {dimension_semantics = [#tpu.dimension_semantics<parallel>], iteration_bounds = array<i64: 2>, scalar_prefetch = 0 : i64, scratch_operands = 0 : i64, tpu.core_type = #tpu.core_type<tc>, window_params = [{transform_indices = @transform_0, window_bounds = array<i64: 16, 16>}, {pipeline_mode = #tpu.pipeline_mode<synchronous>, transform_indices = @transform_1, window_bounds = array<i64: 16, 1024>}, {pipeline_mode = #tpu.pipeline_mode<synchronous>, transform_indices = @transform_2, window_bounds = array<i64: 1, 16>}, {transform_indices = @transform_3, window_bounds = array<i64: 16, 513>}, {transform_indices = @transform_4, window_bounds = array<i64: 16, 513>}]} {
    %c0 = arith.constant 0 : index
    %c0_0 = arith.constant 0 : index
    %0 = vector.load %arg1[%c0, %c0_0] : memref<16x16xf32, #tpu.memory_space<vmem>>, vector<16x16xf32>
    %c0_1 = arith.constant 0 : index
    %c0_2 = arith.constant 0 : index
    %1 = vector.load %arg2[%c0_1, %c0_2] : memref<16x1024xf32, #tpu.memory_space<vmem>>, vector<16x1024xf32>
    %cst = arith.constant dense<0.000000e+00> : vector<16x1024xf32>
    %2 = tpu.matmul %0, %1, %cst {dimension_numbers = #tpu.dot_dimension_numbers<[1], [0], [0], [1], [0, 0, 1, 1], [], []>, precision = #tpu.contract_precision<fp32>} : vector<16x16xf32>, vector<16x1024xf32>, vector<16x1024xf32> -> vector<16x1024xf32>
    %3 = vector.extract_strided_slice %2 {offsets = [0, 0], sizes = [16, 512], strides = [1, 1]} : vector<16x1024xf32> to vector<16x512xf32>
    %4 = vector.extract_strided_slice %2 {offsets = [0, 512], sizes = [16, 512], strides = [1, 1]} : vector<16x1024xf32> to vector<16x512xf32>
    %c0_3 = arith.constant 0 : index
    %c0_4 = arith.constant 0 : index
    %5 = vector.load %arg3[%c0_3, %c0_4] : memref<1x16xf32, #tpu.memory_space<vmem>>, vector<1x16xf32>
    %6 = vector.broadcast %5 : vector<1x16xf32> to vector<16x16xf32>
    %7 = arith.mulf %0, %6 : vector<16x16xf32>
    %cst_5 = arith.constant dense<0.000000e+00> : vector<16xf32>
    %8 = vector.multi_reduction <add>, %7, %cst_5 [1] : vector<16x16xf32> to vector<16xf32>
    %9 = vector.shape_cast %8 : vector<16xf32> to vector<16x1xf32>
    %c0_6 = arith.constant 0 : index
    %c0_7 = arith.constant 0 : index
    %10 = vector.load %arg4[%c0_6, %c0_7] : memref<16x513xf32, #tpu.memory_space<vmem>>, vector<16x512xf32>
    tpu.vector_store %arg4[%c0_6, %c0_7], %3 {strides = array<i32>} : memref<16x513xf32, #tpu.memory_space<vmem>>, vector<16x512xf32>,
    %c0_8 = arith.constant 0 : index
    %c512 = arith.constant 512 : index
    %11 = vector.load %arg4[%c0_8, %c512] : memref<16x513xf32, #tpu.memory_space<vmem>>, vector<16x1xf32>
    tpu.vector_store %arg4[%c0_8, %c512], %9 {strides = array<i32>} : memref<16x513xf32, #tpu.memory_space<vmem>>, vector<16x1xf32>,
    %c0_9 = arith.constant 0 : index
    %c0_10 = arith.constant 0 : index
    %12 = vector.load %arg5[%c0_9, %c0_10] : memref<16x513xf32, #tpu.memory_space<vmem>>, vector<16x512xf32>
    tpu.vector_store %arg5[%c0_9, %c0_10], %4 {strides = array<i32>} : memref<16x513xf32, #tpu.memory_space<vmem>>, vector<16x512xf32>,
    %cst_11 = arith.constant 0.000000e+00 : f32
    %13 = vector.broadcast %cst_11 : f32 to vector<16x1xf32>
    %c0_12 = arith.constant 0 : index
    %c512_13 = arith.constant 512 : index
    %14 = vector.load %arg5[%c0_12, %c512_13] : memref<16x513xf32, #tpu.memory_space<vmem>>, vector<16x1xf32>
    tpu.vector_store %arg5[%c0_12, %c512_13], %13 {strides = array<i32>} : memref<16x513xf32, #tpu.memory_space<vmem>>, vector<16x1xf32>,
    return
  }
  func.func @transform_0(%arg0: i32) -> (i32, i32) {
    %c0_i32 = arith.constant 0 : i32
    %c0_i32_0 = arith.constant 0 : i32
    return %arg0, %c0_i32 : i32, i32
  }
  func.func @transform_1(%arg0: i32) -> (i32, i32) {
    %c0_i32 = arith.constant 0 : i32
    %c0_i32_0 = arith.constant 0 : i32
    %c0_i32_1 = arith.constant 0 : i32
    return %c0_i32, %c0_i32_0 : i32, i32
  }
  func.func @transform_2(%arg0: i32) -> (i32, i32) {
    %c0_i32 = arith.constant 0 : i32
    %c0_i32_0 = arith.constant 0 : i32
    %c0_i32_1 = arith.constant 0 : i32
    return %c0_i32, %c0_i32_0 : i32, i32
  }
  func.func @transform_3(%arg0: i32) -> (i32, i32) {
    %c0_i32 = arith.constant 0 : i32
    %c0_i32_0 = arith.constant 0 : i32
    return %arg0, %c0_i32 : i32, i32
  }
  func.func @transform_4(%arg0: i32) -> (i32, i32) {
    %c0_i32 = arith.constant 0 : i32
    %c0_i32_0 = arith.constant 0 : i32
    return %arg0, %c0_i32 : i32, i32
  }
}

</mosaic_0001>

<llo_original>
// kernel: custom-call
$region0: #{custom-call}
  %s0 = inlined_call_operand.vmem [shape: f32[2,4,3,513], index: 0, kind: input, shape index: {}]
  %s1 = inlined_call_operand.vmem [shape: f32[2,4,3,513], index: 1, kind: input, shape index: {}]
  %s2 = inlined_call_operand.vmem [shape: c64[2,4,3,513], index: 2, kind: output, shape index: {}]
  %s4 = scalar_lea.vmem %s2, 160
  %v5 = vld [vmem:[%s0] sm:$0xff]
  %6 = vst [vmem:[%s2] sm:$0xff] %v5
  %s7 = scalar_lea.vmem %s2, 8
  %s8 = scalar_lea.vmem %s0, 8
  %v9 = vld [vmem:[%s8] sm:$0xff]
  %10 = vst [vmem:[%s7] sm:$0xff] %v9
  %s11 = scalar_lea.vmem %s2, 16
  %s12 = scalar_lea.vmem %s0, 16
  %v13 = vld [vmem:[%s12] sm:$0xff]
  %14 = vst [vmem:[%s11] sm:$0xff] %v13
  %s15 = scalar_lea.vmem %s2, 24
  %s16 = scalar_lea.vmem %s0, 24
  %v17 = vld [vmem:[%s16] sm:$0xff]
  %18 = vst [vmem:[%s15] sm:$0xff] %v17
  %s19 = scalar_lea.vmem %s2, 32
  %s20 = scalar_lea.vmem %s0, 32
  %v21 = vld [vmem:[%s20] sm:$0xff]
  %22 = vst [vmem:[%s19] sm:$0xff] %v21
  %s23 = scalar_lea.vmem %s2, 40
  %s24 = scalar_lea.vmem %s0, 40
  %v25 = vld [vmem:[%s24] sm:$0xff]
  %26 = vst [vmem:[%s23] sm:$0xff] %v25
  %s27 = scalar_lea.vmem %s2, 48
  %s28 = scalar_lea.vmem %s0, 48
  %v29 = vld [vmem:[%s28] sm:$0xff]
  %30 = vst [vmem:[%s27] sm:$0xff] %v29
  %s31 = scalar_lea.vmem %s2, 56
  %s32 = scalar_lea.vmem %s0, 56
  %v33 = vld [vmem:[%s32] sm:$0xff]
  %34 = vst [vmem:[%s31] sm:$0xff] %v33
  %s35 = scalar_lea.vmem %s2, 64
  %s36 = scalar_lea.vmem %s0, 64
  %v37 = vld [vmem:[%s36] sm:$0xff]
  %38 = vst [vmem:[%s35] sm:$0xff] %v37
  %s39 = scalar_lea.vmem %s2, 72
  %s40 = scalar_lea.vmem %s0, 72
  %v41 = vld [vmem:[%s40] sm:$0xff]
  %42 = vst [vmem:[%s39] sm:$0xff] %v41
  %s43 = scalar_lea.vmem %s2, 80
  %s44 = scalar_lea.vmem %s0, 80
  %v45 = vld [vmem:[%s44] sm:$0xff]
  %46 = vst [vmem:[%s43] sm:$0xff] %v45
  %s47 = scalar_lea.vmem %s2, 88
  %s48 = scalar_lea.vmem %s0, 88
  %v49 = vld [vmem:[%s48] sm:$0xff]
  %50 = vst [vmem:[%s47] sm:$0xff] %v49
  %s51 = scalar_lea.vmem %s2, 96
  %s52 = scalar_lea.vmem %s0, 96
  %v53 = vld [vmem:[%s52] sm:$0xff]
  %54 = vst [vmem:[%s51] sm:$0xff] %v53
  %s55 = scalar_lea.vmem %s2, 104
  %s56 = scalar_lea.vmem %s0, 104
  %v57 = vld [vmem:[%s56] sm:$0xff]
  %58 = vst [vmem:[%s55] sm:$0xff] %v57
  %s59 = scalar_lea.vmem %s2, 112
  %s60 = scalar_lea.vmem %s0, 112
  %v61 = vld [vmem:[%s60] sm:$0xff]
  %62 = vst [vmem:[%s59] sm:$0xff] %v61
  %s63 = scalar_lea.vmem %s2, 120
  %s64 = scalar_lea.vmem %s0, 120
  %v65 = vld [vmem:[%s64] sm:$0xff]
  %66 = vst [vmem:[%s63] sm:$0xff] %v65
  %s67 = scalar_lea.vmem %s2, 128
  %s68 = scalar_lea.vmem %s0, 128
  %v69 = vld [vmem:[%s68] sm:$0xff]
  %70 = vst [vmem:[%s67] sm:$0xff] %v69
  %s71 = scalar_lea.vmem %s2, 136
  %s72 = scalar_lea.vmem %s0, 136
  %v73 = vld [vmem:[%s72] sm:$0xff]
  %74 = vst [vmem:[%s71] sm:$0xff] %v73
  %s75 = scalar_lea.vmem %s2, 144
  %s76 = scalar_lea.vmem %s0, 144
  %v77 = vld [vmem:[%s76] sm:$0xff]
  %78 = vst [vmem:[%s75] sm:$0xff] %v77
  %s79 = scalar_lea.vmem %s2, 152
  %s80 = scalar_lea.vmem %s0, 152
  %v81 = vld [vmem:[%s80] sm:$0xff]
  %82 = vst [vmem:[%s79] sm:$0xff] %v81
  %v83 = vld [vmem:[%s1] sm:$0xff]
  %84 = vst [vmem:[%s4] sm:$0xff] %v83
  %s85 = scalar_lea.vmem %s4, 8
  %s86 = scalar_lea.vmem %s1, 8
  %v87 = vld [vmem:[%s86] sm:$0xff]
  %88 = vst [vmem:[%s85] sm:$0xff] %v87
  %s89 = scalar_lea.vmem %s4, 16
  %s90 = scalar_lea.vmem %s1, 16
  %v91 = vld [vmem:[%s90] sm:$0xff]
  %92 = vst [vmem:[%s89] sm:$0xff] %v91
  %s93 = scalar_lea.vmem %s4, 24
  %s94 = scalar_lea.vmem %s1, 24
  %v95 = vld [vmem:[%s94] sm:$0xff]
  %96 = vst [vmem:[%s93] sm:$0xff] %v95
  %s97 = scalar_lea.vmem %s4, 32
  %s98 = scalar_lea.vmem %s1, 32
  %v99 = vld [vmem:[%s98] sm:$0xff]
  %100 = vst [vmem:[%s97] sm:$0xff] %v99
  %s101 = scalar_lea.vmem %s4, 40
  %s102 = scalar_lea.vmem %s1, 40
  %v103 = vld [vmem:[%s102] sm:$0xff]
  %104 = vst [vmem:[%s101] sm:$0xff] %v103
  %s105 = scalar_lea.vmem %s4, 48
  %s106 = scalar_lea.vmem %s1, 48
  %v107 = vld [vmem:[%s106] sm:$0xff]
  %108 = vst [vmem:[%s105] sm:$0xff] %v107
  %s109 = scalar_lea.vmem %s4, 56
  %s110 = scalar_lea.vmem %s1, 56
  %v111 = vld [vmem:[%s110] sm:$0xff]
  %112 = vst [vmem:[%s109] sm:$0xff] %v111
  %s113 = scalar_lea.vmem %s4, 64
  %s114 = scalar_lea.vmem %s1, 64
  %v115 = vld [vmem:[%s114] sm:$0xff]
  %116 = vst [vmem:[%s113] sm:$0xff] %v115
  %s117 = scalar_lea.vmem %s4, 72
  %s118 = scalar_lea.vmem %s1, 72
  %v119 = vld [vmem:[%s118] sm:$0xff]
  %120 = vst [vmem:[%s117] sm:$0xff] %v119
  %s121 = scalar_lea.vmem %s4, 80
  %s122 = scalar_lea.vmem %s1, 80
  %v123 = vld [vmem:[%s122] sm:$0xff]
  %124 = vst [vmem:[%s121] sm:$0xff] %v123
  %s125 = scalar_lea.vmem %s4, 88
  %s126 = scalar_lea.vmem %s1, 88
  %v127 = vld [vmem:[%s126] sm:$0xff]
  %128 = vst [vmem:[%s125] sm:$0xff] %v127
  %s129 = scalar_lea.vmem %s4, 96
  %s130 = scalar_lea.vmem %s1, 96
  %v131 = vld [vmem:[%s130] sm:$0xff]
  %132 = vst [vmem:[%s129] sm:$0xff] %v131
  %s133 = scalar_lea.vmem %s4, 104
  %s134 = scalar_lea.vmem %s1, 104
  %v135 = vld [vmem:[%s134] sm:$0xff]
  %136 = vst [vmem:[%s133] sm:$0xff] %v135
  %s137 = scalar_lea.vmem %s4, 112
  %s138 = scalar_lea.vmem %s1, 112
  %v139 = vld [vmem:[%s138] sm:$0xff]
  %140 = vst [vmem:[%s137] sm:$0xff] %v139
  %s141 = scalar_lea.vmem %s4, 120
  %s142 = scalar_lea.vmem %s1, 120
  %v143 = vld [vmem:[%s142] sm:$0xff]
  %144 = vst [vmem:[%s141] sm:$0xff] %v143
  %s145 = scalar_lea.vmem %s4, 128
  %s146 = scalar_lea.vmem %s1, 128
  %v147 = vld [vmem:[%s146] sm:$0xff]
  %148 = vst [vmem:[%s145] sm:$0xff] %v147
  %s149 = scalar_lea.vmem %s4, 136
  %s150 = scalar_lea.vmem %s1, 136
  %v151 = vld [vmem:[%s150] sm:$0xff]
  %152 = vst [vmem:[%s149] sm:$0xff] %v151
  %s153 = scalar_lea.vmem %s4, 144
  %s154 = scalar_lea.vmem %s1, 144
  %v155 = vld [vmem:[%s154] sm:$0xff]
  %156 = vst [vmem:[%s153] sm:$0xff] %v155
  %s157 = scalar_lea.vmem %s4, 152
  %s158 = scalar_lea.vmem %s1, 152
  %v159 = vld [vmem:[%s158] sm:$0xff]
  %160 = vst [vmem:[%s157] sm:$0xff] %v159

// kernel: _dft_impl.1
$region0: #{_dft_impl.1}
  #allocation0 [shape = 'u32[]', space=smem, size = 0x4, offset = 0x4, fixed_abs, tag = 'smem constant byte address 0x4 - core index']
  #allocation1 [shape = 'u32[144,128]{1,0:T(1,128)}', space=vmem, size = 0x12000, scoped, tag = 'internal scratch']
  %s0 = inlined_call_operand.vmem [shape: f32[24,16], index: 0, kind: input, shape index: {}]
  %s1 = inlined_call_operand.hbm [shape: f32[16,1024], index: 1, kind: input, shape index: {}]
  %s2 = inlined_call_operand.vmem [shape: f32[1,16], index: 2, kind: input, shape index: {}]
  %s3 = inlined_call_operand.vmem [shape: f32[24,513], index: 3, kind: output, shape index: {0}]
  %s4 = inlined_call_operand.vmem [shape: f32[24,513], index: 4, kind: output, shape index: {1}]
  %5 = xla_tuple %s3, %s4
  %s6 = sld [smem:[#allocation0]]
  $region109: #{_dft_impl.1} parent=0
    _
  %s8 = ssub.s32 1, %s6
  %s9 = scalar_select 0, %s8, %s6
  $region1: #{_dft_impl.1} parent=0
    #allocation2 [shape = 'u8[65536]{0}', space=vmem, size = 0x10000, scoped, tag = 'input window, operand 1, single buffered']
    #allocation3 [shape = 's32[2]{0}', space=sflag, size = 0x8, scoped, tag = 'scoped memory for _dft_impl.1']
    #allocation4 [shape = 'u8[81920]{0}', space=vmem, size = 0x14000, scoped, tag = 'output window, operand 0']
    #allocation5 [shape = 'u8[81920]{0}', space=vmem, size = 0x14000, scoped, tag = 'output window, operand 1']
    %10 = vsyncpa [#allocation3], 0
    loop: start=0, step=1, limit=4
    $region2: #{_dft_impl.1} parent=1 // loop_pre_header
      _
    $region3: #{_dft_impl.1} parent=1 // loop_header
      %s12 = sphi 0, %s16
      %p13 = scmp.ge.s32.totalorder %s12, 4
      %s22 = sphi 0, %s24
      %s25 = sphi 0, %s22
      %s26 = sphi 0, %s25
      %s42 = sphi 0, %s26
      %s46 = sphi 0, %s46
      %s48 = sphi 0, %s46
      %s49 = sphi 0, %s48
      %s63 = sphi 0, %s49
      %s67 = sphi 0, %s67
      %s69 = sphi 0, %s67
      %s70 = sphi 0, %s69
      %s84 = sphi 0, %s70
      %s90 = sphi 0, %s92
      %s93 = sphi 0, %s90
      %s94 = sphi 0, %s93
      %s110 = sphi 0, %s94
      %s116 = sphi 0, %s118
      %s119 = sphi 0, %s116
      %s120 = sphi 0, %s119
      %s136 = sphi 0, %s120
    $region4: #{_dft_impl.1} parent=1 // loop_header_branch
      %15 = sbr.rel (%p13) target = $region8
    $region5: #{_dft_impl.1} parent=1 // loop_body
      %s17 = ssub.s32 %s12, 1
      %s18 = ssub.s32 %s12, 2
      %s19 = sadd.s32 %s12, 1
      %s20 = ssub.s32 %s12, %s19
      %p21 = scmp.eq.s32.totalorder %s20, 0
      %s23 = sadd.s32 %s22, 1
      %s24 = scalar_select %p21, %s22, %s23
      %p27 = pneg %p21
      %p28 = scmp.eq.s32.totalorder %s12, 1
      %p29 = por %p27, %p28
      %p30 = scmp.ne.s32.totalorder %s22, %s25
      %p31 = scmp.eq.s32.totalorder %s12, 0
      %p32 = por %p30, %p31
      %p33 = scmp.ne.s32.totalorder %s22, %s25
      %p34 = scmp.eq.s32.totalorder %s17, 1
      %p35 = por %p33, %p34
      %p36 = scmp.ne.s32.totalorder %s25, %s26
      %p37 = scmp.eq.s32.totalorder %s17, 0
      %p38 = por %p36, %p37
      %p39 = scmp.ne.s32.totalorder %s25, %s26
      %p40 = scmp.eq.s32.totalorder %s18, 1
      %p41 = por %p39, %p40
      %p43 = scmp.ne.s32.totalorder %s26, %s42
      %p44 = scmp.eq.s32.totalorder %s18, 0
      %p45 = por %p43, %p44
      %s47 = sadd.s32 %s46, 1
      %p50 = scmp.eq.s32.totalorder %s12, 1
      %p51 = scmp.ne.s32.totalorder %s46, %s48
      %p52 = scmp.eq.s32.totalorder %s12, 0
      %p53 = por %p51, %p52
      %p54 = scmp.ne.s32.totalorder %s46, %s48
      %p55 = scmp.eq.s32.totalorder %s17, 1
      %p56 = por %p54, %p55
      %p57 = scmp.ne.s32.totalorder %s48, %s49
      %p58 = scmp.eq.s32.totalorder %s17, 0
      %p59 = por %p57, %p58
      %p60 = scmp.ne.s32.totalorder %s48, %s49
      %p61 = scmp.eq.s32.totalorder %s18, 1
      %p62 = por %p60, %p61
      %p64 = scmp.ne.s32.totalorder %s49, %s63
      %p65 = scmp.eq.s32.totalorder %s18, 0
      %p66 = por %p64, %p65
      %s68 = sadd.s32 %s67, 1
      %p71 = scmp.eq.s32.totalorder %s12, 1
      %p72 = scmp.ne.s32.totalorder %s67, %s69
      %p73 = scmp.eq.s32.totalorder %s12, 0
      %p74 = por %p72, %p73
      %p75 = scmp.ne.s32.totalorder %s67, %s69
      %p76 = scmp.eq.s32.totalorder %s17, 1
      %p77 = por %p75, %p76
      %p78 = scmp.ne.s32.totalorder %s69, %s70
      %p79 = scmp.eq.s32.totalorder %s17, 0
      %p80 = por %p78, %p79
      %p81 = scmp.ne.s32.totalorder %s69, %s70
      %p82 = scmp.eq.s32.totalorder %s18, 1
      %p83 = por %p81, %p82
      %p85 = scmp.ne.s32.totalorder %s70, %s84
      %p86 = scmp.eq.s32.totalorder %s18, 0
      %p87 = por %p85, %p86
      %s88 = ssub.s32 %s12, %s19
      %p89 = scmp.eq.s32.totalorder %s88, 0
      %s91 = sadd.s32 %s90, 1
      %s92 = scalar_select %p89, %s90, %s91
      %p95 = pneg %p89
      %p96 = scmp.eq.s32.totalorder %s12, 1
      %p97 = por %p95, %p96
      %p98 = scmp.ne.s32.totalorder %s90, %s93
      %p99 = scmp.eq.s32.totalorder %s12, 0
      %p100 = por %p98, %p99
      %p101 = scmp.ne.s32.totalorder %s90, %s93
      %p102 = scmp.eq.s32.totalorder %s17, 1
      %p103 = por %p101, %p102
      %p104 = scmp.ne.s32.totalorder %s93, %s94
      %p105 = scmp.eq.s32.totalorder %s17, 0
      %p106 = por %p104, %p105
      %p107 = scmp.ne.s32.totalorder %s93, %s94
      %p108 = scmp.eq.s32.totalorder %s18, 1
      %p109 = por %p107, %p108
      %p111 = scmp.ne.s32.totalorder %s94, %s110
      %p112 = scmp.eq.s32.totalorder %s18, 0
      %p113 = por %p111, %p112
      %s114 = ssub.s32 %s12, %s19
      %p115 = scmp.eq.s32.totalorder %s114, 0
      %s117 = sadd.s32 %s116, 1
      %s118 = scalar_select %p115, %s116, %s117
      %p121 = pneg %p115
      %p122 = scmp.eq.s32.totalorder %s12, 1
      %p123 = por %p121, %p122
      %p124 = scmp.ne.s32.totalorder %s116, %s119
      %p125 = scmp.eq.s32.totalorder %s12, 0
      %p126 = por %p124, %p125
      %p127 = scmp.ne.s32.totalorder %s116, %s119
      %p128 = scmp.eq.s32.totalorder %s17, 1
      %p129 = por %p127, %p128
      %p130 = scmp.ne.s32.totalorder %s119, %s120
      %p131 = scmp.eq.s32.totalorder %s17, 0
      %p132 = por %p130, %p131
      %p133 = scmp.ne.s32.totalorder %s119, %s120
      %p134 = scmp.eq.s32.totalorder %s18, 1
      %p135 = por %p133, %p134
      %p137 = scmp.ne.s32.totalorder %s120, %s136
      %p138 = scmp.eq.s32.totalorder %s18, 0
      %p139 = por %p137, %p138
      %p140 = scmp.le.s32.totalorder 1, %s12
      %p141 = scmp.lt.s32.totalorder %s12, 3
      %p142 = pnand %p140, %p141
      %p143 = pneg %p142
      // Predicated region
      $region9: #{_dft_impl.1} parent=5 // pred_check
        _
      $region10: #{_dft_impl.1} parent=5 // pred_check_branch
        %145 = sbr.rel (%p142) target = $region12
      $region11: #{_dft_impl.1} parent=5 // pred_region
        %s146 = ssub.s32 %s12, 1
        // Predicated region
        $region13: #{_dft_impl.1} parent=11 // pred_check
          %p147 = pneg %p59
        $region14: #{_dft_impl.1} parent=11 // pred_check_branch
          %149 = sbr.rel (%p147) target = $region16
        $region15: #{_dft_impl.1} parent=11 // pred_region
          %s151 = ssub.s32 2048, 2048
          %152 = vsyncadd [#allocation3], %s151
          %s153 = sshll.u32 [#allocation2], 4
          %s154 = int_to_ptr.vmem [resolvable:$true] %s153
          %159 = dma.hbm_to_vmem [thread:$0]  %s1, 2048, %s154, [#allocation3], 1024, 1024, 64
        $region16: #{_dft_impl.1} parent=11 // pred_fallthru
          _
        // Predicated region
        $region17: #{_dft_impl.1} parent=11 // pred_check
          %p160 = pneg %p80
        $region18: #{_dft_impl.1} parent=11 // pred_check_branch
          %162 = sbr.rel (%p160) target = $region20
        $region19: #{_dft_impl.1} parent=11 // pred_region
          _
        $region20: #{_dft_impl.1} parent=11 // pred_fallthru
          _
      $region12: #{_dft_impl.1} parent=5 // pred_fallthru
        _
      %p163 = scmp.lt.s32.totalorder %s12, 2
      // Predicated region
      $region21: #{_dft_impl.1} parent=5 // pred_check
        %p164 = pneg %p163
      $region22: #{_dft_impl.1} parent=5 // pred_check_branch
        %166 = sbr.rel (%p164) target = $region24
      $region23: #{_dft_impl.1} parent=5 // pred_region
        // Predicated region
        $region25: #{_dft_impl.1} parent=23 // pred_check
          %p167 = pneg %p32
        $region26: #{_dft_impl.1} parent=23 // pred_check_branch
          %169 = sbr.rel (%p167) target = $region28
        $region27: #{_dft_impl.1} parent=23 // pred_region
          %s170 = smul.u32 2, %s12
          %s171 = ssub.s32 3, %s170
          %p172 = scmp.lt.s32.totalorder %s171, 2
          %s173 = scalar_select %p172, %s171, 2
          %s174 = smul.u32 128, %s173
          %p175 = scmp.lt.s32.totalorder %s170, 2
          %s176 = scalar_select %p175, %s170, 2
          %s177 = smul.addr %s176, 8
          %s178 = scalar_lea.vmem %s0, %s177
          %s179 = smul.u32 2, %s12
          %s180 = ssub.s32 3, %s179
          %p181 = scmp.lt.s32.totalorder %s180, 2
          %s182 = scalar_select %p181, %s180, 2
          %s183 = smul.u32 128, %s182
        $region28: #{_dft_impl.1} parent=23 // pred_fallthru
          _
      $region24: #{_dft_impl.1} parent=5 // pred_fallthru
        _
      %p184 = scmp.le.s32.totalorder 1, %s12
      %p185 = scmp.lt.s32.totalorder %s12, 3
      %p186 = pnand %p184, %p185
      %p187 = pneg %p186
      // Predicated region
      $region29: #{_dft_impl.1} parent=5 // pred_check
        _
      $region30: #{_dft_impl.1} parent=5 // pred_check_branch
        %189 = sbr.rel (%p186) target = $region32
      $region31: #{_dft_impl.1} parent=5 // pred_region
        %s190 = ssub.s32 %s12, 1
        // Predicated region
        $region33: #{_dft_impl.1} parent=31 // pred_check
          %p191 = pneg %p59
        $region34: #{_dft_impl.1} parent=31 // pred_check_branch
          %193 = sbr.rel (%p191) target = $region36
        $region35: #{_dft_impl.1} parent=31 // pred_region
          %194 = dma.done [#allocation3], 2048
        $region36: #{_dft_impl.1} parent=31 // pred_fallthru
          _
        %s195 = smul.u32 2, %s17
        %s196 = ssub.s32 3, %s195
        %p197 = scmp.lt.s32.totalorder %s196, 2
        %s198 = scalar_select %p197, %s196, 2
        %s199 = smul.u32 128, %s198
        %p200 = scmp.lt.s32.totalorder %s195, 2
        %s201 = scalar_select %p200, %s195, 2
        %s202 = smul.addr %s201, 8
        %s203 = scalar_lea.vmem %s0, %s202
        %p204 = pneg %p38
        %p205 = pneg %p35
        %p206 = pneg %p59
        %p207 = pneg %p56
        %p208 = pneg %p80
        %p209 = pneg %p77
        %p210 = pneg %p106
        %p211 = pneg %p103
        %s212 = sand.u32 %s93, 1
        %s213 = sand.u32 %s93, 1
        %s214 = smul.addr %s213, 80
        %s215 = scalar_lea.vmem [#allocation4], %s214
        %p216 = pneg %p132
        %p217 = pneg %p129
        %s218 = sand.u32 %s119, 1
        %s219 = sand.u32 %s119, 1
        %s220 = smul.addr %s219, 80
        %s221 = scalar_lea.vmem [#allocation5], %s220
        %s222 = smul.u32 2, %s17
        %s223 = ssub.s32 3, %s222
        %p224 = scmp.lt.s32.totalorder %s223, 2
        %s225 = scalar_select %p224, %s223, 2
        %s226 = smul.u32 128, %s225
        %p227 = scmp.lt.s32.totalorder %s222, 2
        %s228 = scalar_select %p227, %s222, 2
        %s229 = smul.addr %s228, 8
        %s230 = scalar_lea.vmem %s0, %s229
        %s231 = smul.u32 2, %s17
        %s232 = ssub.s32 3, %s231
        %p233 = scmp.lt.s32.totalorder %s232, 2
        %s234 = scalar_select %p233, %s232, 2
        %s235 = smul.u32 128, %s234
        %s236 = smul.u32 2, %s17
        %s237 = ssub.s32 3, %s236
        %p238 = scmp.lt.s32.totalorder %s237, 2
        %s239 = scalar_select %p238, %s237, 2
        %s240 = smul.u32 128, %s239
        %s241 = smul.u32 %s240, 5
        %s242 = smul.u32 2, %s17
        %s243 = ssub.s32 3, %s242
        %p244 = scmp.lt.s32.totalorder %s243, 2
        %s245 = scalar_select %p244, %s243, 2
        %s246 = smul.u32 128, %s245
        %s247 = smul.u32 %s246, 5
        %v248 = vld [vmem:[%s230] sm:$0xff]
        %v249 = vld [vmem:[%s230 + $0x8] sm:$0xff]
        %v250 = vld [vmem:[#allocation2] sm:$0xff]
        %v251 = vld [vmem:[#allocation2 + $0x8] sm:$0xff]
        %v252 = vld [vmem:[#allocation2 + $0x10] sm:$0xff]
        %v253 = vld [vmem:[#allocation2 + $0x18] sm:$0xff]
        %v254 = vld [vmem:[#allocation2 + $0x20] sm:$0xff]
        %v255 = vld [vmem:[#allocation2 + $0x28] sm:$0xff]
        %v256 = vld [vmem:[#allocation2 + $0x30] sm:$0xff]
        %v257 = vld [vmem:[#allocation2 + $0x38] sm:$0xff]
        %v258 = vld [vmem:[#allocation2 + $0x40] sm:$0xff]
        %v259 = vld [vmem:[#allocation2 + $0x48] sm:$0xff]
        %v260 = vld [vmem:[#allocation2 + $0x50] sm:$0xff]
        %v261 = vld [vmem:[#allocation2 + $0x58] sm:$0xff]
        %v262 = vld [vmem:[#allocation2 + $0x60] sm:$0xff]
        %v263 = vld [vmem:[#allocation2 + $0x68] sm:$0xff]
        %v264 = vld [vmem:[#allocation2 + $0x70] sm:$0xff]
        %v265 = vld [vmem:[#allocation2 + $0x78] sm:$0xff]
        %vm266 = vcmask 130048
        %v268 = vsel %vm266, %v248, 0
        %v271 = vsel %vm266, %v249, 0
        %v273 = vand.u32 %v251, 4294901760
        %274 = vmatprep.subr.mxu0 %v273
        %v275 = vand.u32 %v250, 4294901760
        %276 = vmatpush1.msra.mxu0 %v275
        %v277 = vand.u32 %v259, 4294901760
        %278 = vmatprep.subr.mxu0 %v277
        %v279 = vand.u32 %v258, 4294901760
        %280 = vmatpush1.msra.mxu0 %v279
        %281 = vmatprep.subr.mxu0 0.0
        %282 = vmatpush1.msra.mxu0 0.0
        %283 = vmatprep.subr.mxu0 0.0
        %284 = vmatpush1.msra.mxu0 0.0
        %285 = vmatprep.subr.mxu0 0.0
        %286 = vmatpush1.msra.mxu0 0.0
        %287 = vmatprep.subr.mxu0 0.0
        %288 = vmatpush1.msra.mxu0 0.0
        %289 = vmatprep.subr.mxu0 0.0
        %290 = vmatpush1.msra.mxu0 0.0
        %291 = vmatprep.subr.mxu0 0.0
        %292 = vmatpush1.msra.mxu0 0.0
        %293 = vmatprep.subr.mxu0 0.0
        %294 = vmatpush1.msra.mxu0 0.0
        %295 = vmatprep.subr.mxu0 0.0
        %296 = vmatpush1.msra.mxu0 0.0
        %297 = vmatprep.subr.mxu0 0.0
        %298 = vmatpush1.msra.mxu0 0.0
        %299 = vmatprep.subr.mxu0 0.0
        %300 = vmatpush1.msra.mxu0 0.0
        %301 = vmatprep.subr.mxu0 0.0
        %302 = vmatpush1.msra.mxu0 0.0
        %303 = vmatprep.subr.mxu0 0.0
        %304 = vmatpush1.msra.mxu0 0.0
        %305 = vmatprep.subr.mxu0 0.0
        %306 = vmatpush1.msra.mxu0 0.0
        %307 = vmatprep.subr.mxu0 0.0
        %308 = vmatpush1.msra.mxu0 0.0
        %309 = vmatprep.subr.mxu0 0.0
        %310 = vmatpush1.msra.mxu0 0.0
        %311 = vmatprep.subr.mxu0 0.0
        %312 = vmatpush1.msra.mxu0 0.0
        %313 = vmatprep.subr.mxu0 0.0
        %314 = vmatpush1.msra.mxu0 0.0
        %315 = vmatprep.subr.mxu0 0.0
        %316 = vmatpush1.msra.mxu0 0.0
        %317 = vmatprep.subr.mxu0 0.0
        %318 = vmatpush1.msra.mxu0 0.0
        %319 = vmatprep.subr.mxu0 0.0
        %320 = vmatpush1.msra.mxu0 0.0
        %321 = vmatprep.subr.mxu0 0.0
        %322 = vmatpush1.msra.mxu0 0.0
        %323 = vmatprep.subr.mxu0 0.0
        %324 = vmatpush1.msra.mxu0 0.0
        %325 = vmatprep.subr.mxu0 0.0
        %326 = vmatpush1.msra.mxu0 0.0
        %327 = vmatprep.subr.mxu0 0.0
        %328 = vmatpush1.msra.mxu0 0.0
        %329 = vmatprep.subr.mxu0 0.0
        %330 = vmatpush1.msra.mxu0 0.0
        %331 = vmatprep.subr.mxu0 0.0
        %332 = vmatpush1.msra.mxu0 0.0
        %333 = vmatprep.subr.mxu0 0.0
        %334 = vmatpush1.msra.mxu0 0.0
        %335 = vmatprep.subr.mxu0 0.0
        %336 = vmatpush1.msra.mxu0 0.0
        %337 = vmatprep.subr.mxu0 0.0
        %338 = vmatpush1.msra.mxu0 0.0
        %339 = vmatprep.subr.mxu0 0.0
        %340 = vmatpush1.msra.mxu0 0.0
        %341 = vmatprep.mubr.f32.mxu0 0.0
        %v342 = vand.u32 %v268, 4294901760
        %v343 = vsub.f32 %v268, %v342
        %v344 = vand.u32 %v343, 4294901760
        %v345 = vsub.f32 %v343, %v344
        %v346 = vand.u32 %v345, 4294901760
        %347 = vmatmul.mubr.f32.gmra.mrb[0].mxu0 %v346
        %v348 = vpop.f32.mrb[0].mxu0
        %v349 = vadd.f32 0.0, %v348
        %v350 = vpop.f32.mrb[0].mxu0
        %v351 = vadd.f32 0.0, %v350
        %352 = vmatprep.mubr.f32.mxu0 0.0
        %v353 = vand.u32 %v271, 4294901760
        %v354 = vsub.f32 %v271, %v353
        %v355 = vand.u32 %v354, 4294901760
        %v356 = vsub.f32 %v354, %v355
        %v357 = vand.u32 %v356, 4294901760
        %358 = vmatmul.mubr.f32.gmra.mrb[0].mxu0 %v357
        %v359 = vpop.f32.mrb[0].mxu0
        %v360 = vadd.f32 0.0, %v359
        %v361 = vpop.f32.mrb[0].mxu0
        %v362 = vadd.f32 0.0, %v361
        %363 = vdwg.mxu0
        %v364 = vand.u32 %v251, 4294901760
        %v365 = vsub.f32 %v251, %v364
        %v366 = vand.u32 %v365, 4294901760
        %v367 = vsub.f32 %v365, %v366
        %v368 = vand.u32 %v367, 4294901760
        %369 = vmatprep.subr.mxu0 %v368
        %v370 = vand.u32 %v250, 4294901760
        %v371 = vsub.f32 %v250, %v370
        %v372 = vand.u32 %v371, 4294901760
        %v373 = vsub.f32 %v371, %v372
        %v374 = vand.u32 %v373, 4294901760
        %375 = vmatpush1.msra.mxu0 %v374
        %v376 = vand.u32 %v259, 4294901760
        %v377 = vsub.f32 %v259, %v376
        %v378 = vand.u32 %v377, 4294901760
        %v379 = vsub.f32 %v377, %v378
        %v380 = vand.u32 %v379, 4294901760
        %381 = vmatprep.subr.mxu0 %v380
        %v382 = vand.u32 %v258, 4294901760
        %v383 = vsub.f32 %v258, %v382
        %v384 = vand.u32 %v383, 4294901760
        %v385 = vsub.f32 %v383, %v384
        %v386 = vand.u32 %v385, 4294901760
        %387 = vmatpush1.msra.mxu0 %v386
        %388 = vmatprep.subr.mxu0 0.0
        %389 = vmatpush1.msra.mxu0 0.0
        %390 = vmatprep.subr.mxu0 0.0
        %391 = vmatpush1.msra.mxu0 0.0
        %392 = vmatprep.subr.mxu0 0.0
        %393 = vmatpush1.msra.mxu0 0.0
        %394 = vmatprep.subr.mxu0 0.0
        %395 = vmatpush1.msra.mxu0 0.0
        %396 = vmatprep.subr.mxu0 0.0
        %397 = vmatpush1.msra.mxu0 0.0
        %398 = vmatprep.subr.mxu0 0.0
        %399 = vmatpush1.msra.mxu0 0.0
        %400 = vmatprep.subr.mxu0 0.0
        %401 = vmatpush1.msra.mxu0 0.0
        %402 = vmatprep.subr.mxu0 0.0
        %403 = vmatpush1.msra.mxu0 0.0
        %404 = vmatprep.subr.mxu0 0.0
        %405 = vmatpush1.msra.mxu0 0.0
        %406 = vmatprep.subr.mxu0 0.0
        %407 = vmatpush1.msra.mxu0 0.0
        %408 = vmatprep.subr.mxu0 0.0
        %409 = vmatpush1.msra.mxu0 0.0
        %410 = vmatprep.subr.mxu0 0.0
        %411 = vmatpush1.msra.mxu0 0.0
        %412 = vmatprep.subr.mxu0 0.0
        %413 = vmatpush1.msra.mxu0 0.0
        %414 = vmatprep.subr.mxu0 0.0
        %415 = vmatpush1.msra.mxu0 0.0
        %416 = vmatprep.subr.mxu0 0.0
        %417 = vmatpush1.msra.mxu0 0.0
        %418 = vmatprep.subr.mxu0 0.0
        %419 = vmatpush1.msra.mxu0 0.0
        %420 = vmatprep.subr.mxu0 0.0
        %421 = vmatpush1.msra.mxu0 0.0
        %422 = vmatprep.subr.mxu0 0.0
        %423 = vmatpush1.msra.mxu0 0.0
        %424 = vmatprep.subr.mxu0 0.0
        %425 = vmatpush1.msra.mxu0 0.0
        %426 = vmatprep.subr.mxu0 0.0
        %427 = vmatpush1.msra.mxu0 0.0
        %428 = vmatprep.subr.mxu0 0.0
        %429 = vmatpush1.msra.mxu0 0.0
        %430 = vmatprep.subr.mxu0 0.0
        %431 = vmatpush1.msra.mxu0 0.0
        %432 = vmatprep.subr.mxu0 0.0
        %433 = vmatpush1.msra.mxu0 0.0
        %434 = vmatprep.subr.mxu0 0.0
        %435 = vmatpush1.msra.mxu0 0.0
        %436 = vmatprep.subr.mxu0 0.0
        %437 = vmatpush1.msra.mxu0 0.0
        %438 = vmatprep.subr.mxu0 0.0
        %439 = vmatpush1.msra.mxu0 0.0
        %440 = vmatprep.subr.mxu0 0.0
        %441 = vmatpush1.msra.mxu0 0.0
        %442 = vmatprep.subr.mxu0 0.0
        %443 = vmatpush1.msra.mxu0 0.0
        %444 = vmatprep.subr.mxu0 0.0
        %445 = vmatpush1.msra.mxu0 0.0
        %446 = vmatprep.subr.mxu0 0.0
        %447 = vmatpush1.msra.mxu0 0.0
        %448 = vmatprep.mubr.f32.mxu0 0.0
        %v449 = vand.u32 %v268, 4294901760
        %450 = vmatmul.mubr.f32.gmra.mrb[0].mxu0 %v449
        %v451 = vpop.f32.mrb[0].mxu0
        %v452 = vadd.f32 %v349, %v451
        %v453 = vpop.f32.mrb[0].mxu0
        %v454 = vadd.f32 %v351, %v453
        %455 = vmatprep.mubr.f32.mxu0 0.0
        %v456 = vand.u32 %v271, 4294901760
        %457 = vmatmul.mubr.f32.gmra.mrb[0].mxu0 %v456
        %v458 = vpop.f32.mrb[0].mxu0
        %v459 = vadd.f32 %v360, %v458
        %v460 = vpop.f32.mrb[0].mxu0
        %v461 = vadd.f32 %v362, %v460
        %462 = vdwg.mxu0
        %v463 = vand.u32 %v251, 4294901760
        %v464 = vsub.f32 %v251, %v463
        %465 = vmatprep.subr.mxu0 %v464
        %v466 = vand.u32 %v250, 4294901760
        %v467 = vsub.f32 %v250, %v466
        %468 = vmatpush1.msra.mxu0 %v467
        %v469 = vand.u32 %v259, 4294901760
        %v470 = vsub.f32 %v259, %v469
        %471 = vmatprep.subr.mxu0 %v470
        %v472 = vand.u32 %v258, 4294901760
        %v473 = vsub.f32 %v258, %v472
        %474 = vmatpush1.msra.mxu0 %v473
        %475 = vmatprep.subr.mxu0 0.0
        %476 = vmatpush1.msra.mxu0 0.0
        %477 = vmatprep.subr.mxu0 0.0
        %478 = vmatpush1.msra.mxu0 0.0
        %479 = vmatprep.subr.mxu0 0.0
        %480 = vmatpush1.msra.mxu0 0.0
        %481 = vmatprep.subr.mxu0 0.0
        %482 = vmatpush1.msra.mxu0 0.0
        %483 = vmatprep.subr.mxu0 0.0
        %484 = vmatpush1.msra.mxu0 0.0
        %485 = vmatprep.subr.mxu0 0.0
        %486 = vmatpush1.msra.mxu0 0.0
        %487 = vmatprep.subr.mxu0 0.0
        %488 = vmatpush1.msra.mxu0 0.0
        %489 = vmatprep.subr.mxu0 0.0
        %490 = vmatpush1.msra.mxu0 0.0
        %491 = vmatprep.subr.mxu0 0.0
        %492 = vmatpush1.msra.mxu0 0.0
        %493 = vmatprep.subr.mxu0 0.0
        %494 = vmatpush1.msra.mxu0 0.0
        %495 = vmatprep.subr.mxu0 0.0
        %496 = vmatpush1.msra.mxu0 0.0
        %497 = vmatprep.subr.mxu0 0.0
        %498 = vmatpush1.msra.mxu0 0.0
        %499 = vmatprep.subr.mxu0 0.0
        %500 = vmatpush1.msra.mxu0 0.0
        %501 = vmatprep.subr.mxu0 0.0
        %502 = vmatpush1.msra.mxu0 0.0
        %503 = vmatprep.subr.mxu0 0.0
        %504 = vmatpush1.msra.mxu0 0.0
        %505 = vmatprep.subr.mxu0 0.0
        %506 = vmatpush1.msra.mxu0 0.0
        %507 = vmatprep.subr.mxu0 0.0
        %508 = vmatpush1.msra.mxu0 0.0
        %509 = vmatprep.subr.mxu0 0.0
        %510 = vmatpush1.msra.mxu0 0.0
        %511 = vmatprep.subr.mxu0 0.0
        %512 = vmatpush1.msra.mxu0 0.0
        %513 = vmatprep.subr.mxu0 0.0
        %514 = vmatpush1.msra.mxu0 0.0
        %515 = vmatprep.subr.mxu0 0.0
        %516 = vmatpush1.msra.mxu0 0.0
        %517 = vmatprep.subr.mxu0 0.0
        %518 = vmatpush1.msra.mxu0 0.0
        %519 = vmatprep.subr.mxu0 0.0
        %520 = vmatpush1.msra.mxu0 0.0
        %521 = vmatprep.subr.mxu0 0.0
        %522 = vmatpush1.msra.mxu0 0.0
        %523 = vmatprep.subr.mxu0 0.0
        %524 = vmatpush1.msra.mxu0 0.0
        %525 = vmatprep.subr.mxu0 0.0
        %526 = vmatpush1.msra.mxu0 0.0
        %527 = vmatprep.subr.mxu0 0.0
        %528 = vmatpush1.msra.mxu0 0.0
        %529 = vmatprep.subr.mxu0 0.0
        %530 = vmatpush1.msra.mxu0 0.0
        %531 = vmatprep.subr.mxu0 0.0
        %532 = vmatpush1.msra.mxu0 0.0
        %533 = vmatprep.subr.mxu0 0.0
        %534 = vmatpush1.msra.mxu0 0.0
        %535 = vmatprep.mubr.f32.mxu0 0.0
        %v536 = vand.u32 %v268, 4294901760
        %v537 = vsub.f32 %v268, %v536
        %538 = vmatmul.mubr.f32.gmra.mrb[0].mxu0 %v537
        %v539 = vpop.f32.mrb[0].mxu0
        %v540 = vadd.f32 %v452, %v539
        %v541 = vpop.f32.mrb[0].mxu0
        %v542 = vadd.f32 %v454, %v541
        %543 = vmatprep.mubr.f32.mxu0 0.0
        %v544 = vand.u32 %v271, 4294901760
        %v545 = vsub.f32 %v271, %v544
        %546 = vmatmul.mubr.f32.gmra.mrb[0].mxu0 %v545
        %v547 = vpop.f32.mrb[0].mxu0
        %v548 = vadd.f32 %v459, %v547
        %v549 = vpop.f32.mrb[0].mxu0
        %v550 = vadd.f32 %v461, %v549
        %551 = vdwg.mxu0
        %v552 = vand.u32 %v251, 4294901760
        %553 = vmatprep.subr.mxu0 %v552
        %v554 = vand.u32 %v250, 4294901760
        %555 = vmatpush1.msra.mxu0 %v554
        %v556 = vand.u32 %v259, 4294901760
        %557 = vmatprep.subr.mxu0 %v556
        %v558 = vand.u32 %v258, 4294901760
        %559 = vmatpush1.msra.mxu0 %v558
        %560 = vmatprep.subr.mxu0 0.0
        %561 = vmatpush1.msra.mxu0 0.0
        %562 = vmatprep.subr.mxu0 0.0
        %563 = vmatpush1.msra.mxu0 0.0
        %564 = vmatprep.subr.mxu0 0.0
        %565 = vmatpush1.msra.mxu0 0.0
        %566 = vmatprep.subr.mxu0 0.0
        %567 = vmatpush1.msra.mxu0 0.0
        %568 = vmatprep.subr.mxu0 0.0
        %569 = vmatpush1.msra.mxu0 0.0
        %570 = vmatprep.subr.mxu0 0.0
        %571 = vmatpush1.msra.mxu0 0.0
        %572 = vmatprep.subr.mxu0 0.0
        %573 = vmatpush1.msra.mxu0 0.0
        %574 = vmatprep.subr.mxu0 0.0
        %575 = vmatpush1.msra.mxu0 0.0
        %576 = vmatprep.subr.mxu0 0.0
        %577 = vmatpush1.msra.mxu0 0.0
        %578 = vmatprep.subr.mxu0 0.0
        %579 = vmatpush1.msra.mxu0 0.0
        %580 = vmatprep.subr.mxu0 0.0
        %581 = vmatpush1.msra.mxu0 0.0
        %582 = vmatprep.subr.mxu0 0.0
        %583 = vmatpush1.msra.mxu0 0.0
        %584 = vmatprep.subr.mxu0 0.0
        %585 = vmatpush1.msra.mxu0 0.0
        %586 = vmatprep.subr.mxu0 0.0
        %587 = vmatpush1.msra.mxu0 0.0
        %588 = vmatprep.subr.mxu0 0.0
        %589 = vmatpush1.msra.mxu0 0.0
        %590 = vmatprep.subr.mxu0 0.0
        %591 = vmatpush1.msra.mxu0 0.0
        %592 = vmatprep.subr.mxu0 0.0
        %593 = vmatpush1.msra.mxu0 0.0
        %594 = vmatprep.subr.mxu0 0.0
        %595 = vmatpush1.msra.mxu0 0.0
        %596 = vmatprep.subr.mxu0 0.0
        %597 = vmatpush1.msra.mxu0 0.0
        %598 = vmatprep.subr.mxu0 0.0
        %599 = vmatpush1.msra.mxu0 0.0
        %600 = vmatprep.subr.mxu0 0.0
        %601 = vmatpush1.msra.mxu0 0.0
        %602 = vmatprep.subr.mxu0 0.0
        %603 = vmatpush1.msra.mxu0 0.0
        %604 = vmatprep.subr.mxu0 0.0
        %605 = vmatpush1.msra.mxu0 0.0
        %606 = vmatprep.subr.mxu0 0.0
        %607 = vmatpush1.msra.mxu0 0.0
        %608 = vmatprep.subr.mxu0 0.0
        %609 = vmatpush1.msra.mxu0 0.0
        %610 = vmatprep.subr.mxu0 0.0
        %611 = vmatpush1.msra.mxu0 0.0
        %612 = vmatprep.subr.mxu0 0.0
        %613 = vmatpush1.msra.mxu0 0.0
        %614 = vmatprep.subr.mxu0 0.0
        %615 = vmatpush1.msra.mxu0 0.0
        %616 = vmatprep.subr.mxu0 0.0
        %617 = vmatpush1.msra.mxu0 0.0
        %618 = vmatprep.subr.mxu0 0.0
        %619 = vmatpush1.msra.mxu0 0.0
        %620 = vmatprep.mubr.f32.mxu0 0.0
        %v621 = vand.u32 %v268, 4294901760
        %v622 = vsub.f32 %v268, %v621
        %v623 = vand.u32 %v622, 4294901760
        %624 = vmatmul.mubr.f32.gmra.mrb[0].mxu0 %v623
        %v625 = vpop.f32.mrb[0].mxu0
        %v626 = vadd.f32 %v540, %v625
        %v627 = vpop.f32.mrb[0].mxu0
        %v628 = vadd.f32 %v542, %v627
        %629 = vmatprep.mubr.f32.mxu0 0.0
        %v630 = vand.u32 %v271, 4294901760
        %v631 = vsub.f32 %v271, %v630
        %v632 = vand.u32 %v631, 4294901760
        %633 = vmatmul.mubr.f32.gmra.mrb[0].mxu0 %v632
        %v634 = vpop.f32.mrb[0].mxu0
        %v635 = vadd.f32 %v548, %v634
        %v636 = vpop.f32.mrb[0].mxu0
        %v637 = vadd.f32 %v550, %v636
        %638 = vdwg.mxu0
        %v639 = vand.u32 %v251, 4294901760
        %v640 = vsub.f32 %v251, %v639
        %v641 = vand.u32 %v640, 4294901760
        %642 = vmatprep.subr.mxu0 %v641
        %v643 = vand.u32 %v250, 4294901760
        %v644 = vsub.f32 %v250, %v643
        %v645 = vand.u32 %v644, 4294901760
        %646 = vmatpush1.msra.mxu0 %v645
        %v647 = vand.u32 %v259, 4294901760
        %v648 = vsub.f32 %v259, %v647
        %v649 = vand.u32 %v648, 4294901760
        %650 = vmatprep.subr.mxu0 %v649
        %v651 = vand.u32 %v258, 4294901760
        %v652 = vsub.f32 %v258, %v651
        %v653 = vand.u32 %v652, 4294901760
        %654 = vmatpush1.msra.mxu0 %v653
        %655 = vmatprep.subr.mxu0 0.0
        %656 = vmatpush1.msra.mxu0 0.0
        %657 = vmatprep.subr.mxu0 0.0
        %658 = vmatpush1.msra.mxu0 0.0
        %659 = vmatprep.subr.mxu0 0.0
        %660 = vmatpush1.msra.mxu0 0.0
        %661 = vmatprep.subr.mxu0 0.0
        %662 = vmatpush1.msra.mxu0 0.0
        %663 = vmatprep.subr.mxu0 0.0
        %664 = vmatpush1.msra.mxu0 0.0
        %665 = vmatprep.subr.mxu0 0.0
        %666 = vmatpush1.msra.mxu0 0.0
        %667 = vmatprep.subr.mxu0 0.0
        %668 = vmatpush1.msra.mxu0 0.0
        %669 = vmatprep.subr.mxu0 0.0
        %670 = vmatpush1.msra.mxu0 0.0
        %671 = vmatprep.subr.mxu0 0.0
        %672 = vmatpush1.msra.mxu0 0.0
        %673 = vmatprep.subr.mxu0 0.0
        %674 = vmatpush1.msra.mxu0 0.0
        %675 = vmatprep.subr.mxu0 0.0
        %676 = vmatpush1.msra.mxu0 0.0
        %677 = vmatprep.subr.mxu0 0.0
        %678 = vmatpush1.msra.mxu0 0.0
        %679 = vmatprep.subr.mxu0 0.0
        %680 = vmatpush1.msra.mxu0 0.0
        %681 = vmatprep.subr.mxu0 0.0
        %682 = vmatpush1.msra.mxu0 0.0
        %683 = vmatprep.subr.mxu0 0.0
        %684 = vmatpush1.msra.mxu0 0.0
        %685 = vmatprep.subr.mxu0 0.0
        %686 = vmatpush1.msra.mxu0 0.0
        %687 = vmatprep.subr.mxu0 0.0
        %688 = vmatpush1.msra.mxu0 0.0
        %689 = vmatprep.subr.mxu0 0.0
        %690 = vmatpush1.msra.mxu0 0.0
        %691 = vmatprep.subr.mxu0 0.0
        %692 = vmatpush1.msra.mxu0 0.0
        %693 = vmatprep.subr.mxu0 0.0
        %694 = vmatpush1.msra.mxu0 0.0
        %695 = vmatprep.subr.mxu0 0.0
        %696 = vmatpush1.msra.mxu0 0.0
        %697 = vmatprep.subr.mxu0 0.0
        %698 = vmatpush1.msra.mxu0 0.0
        %699 = vmatprep.subr.mxu0 0.0
        %700 = vmatpush1.msra.mxu0 0.0
        %701 = vmatprep.subr.mxu0 0.0
        %702 = vmatpush1.msra.mxu0 0.0
        %703 = vmatprep.subr.mxu0 0.0
        %704 = vmatpush1.msra.mxu0 0.0
        %705 = vmatprep.subr.mxu0 0.0
        %706 = vmatpush1.msra.mxu0 0.0
        %707 = vmatprep.subr.mxu0 0.0
        %708 = vmatpush1.msra.mxu0 0.0
        %709 = vmatprep.subr.mxu0 0.0
        %710 = vmatpush1.msra.mxu0 0.0
        %711 = vmatprep.subr.mxu0 0.0
        %712 = vmatpush1.msra.mxu0 0.0
        %713 = vmatprep.subr.mxu0 0.0
        %714 = vmatpush1.msra.mxu0 0.0
        %715 = vmatprep.mubr.f32.mxu0 0.0
        %v716 = vand.u32 %v268, 4294901760
        %717 = vmatmul.mubr.f32.gmra.mrb[0].mxu0 %v716
        %v718 = vpop.f32.mrb[0].mxu0
        %v719 = vadd.f32 %v626, %v718
        %v720 = vpop.f32.mrb[0].mxu0
        %v721 = vadd.f32 %v628, %v720
        %722 = vmatprep.mubr.f32.mxu0 0.0
        %v723 = vand.u32 %v271, 4294901760
        %724 = vmatmul.mubr.f32.gmra.mrb[0].mxu0 %v723
        %v725 = vpop.f32.mrb[0].mxu0
        %v726 = vadd.f32 %v635, %v725
        %v727 = vpop.f32.mrb[0].mxu0
        %v728 = vadd.f32 %v637, %v727
        %729 = vdwg.mxu0
        %v730 = vand.u32 %v251, 4294901760
        %731 = vmatprep.subr.mxu0 %v730
        %v732 = vand.u32 %v250, 4294901760
        %733 = vmatpush1.msra.mxu0 %v732
        %v734 = vand.u32 %v259, 4294901760
        %735 = vmatprep.subr.mxu0 %v734
        %v736 = vand.u32 %v258, 4294901760
        %737 = vmatpush1.msra.mxu0 %v736
        %738 = vmatprep.subr.mxu0 0.0
        %739 = vmatpush1.msra.mxu0 0.0
        %740 = vmatprep.subr.mxu0 0.0
        %741 = vmatpush1.msra.mxu0 0.0
        %742 = vmatprep.subr.mxu0 0.0
        %743 = vmatpush1.msra.mxu0 0.0
        %744 = vmatprep.subr.mxu0 0.0
        %745 = vmatpush1.msra.mxu0 0.0
        %746 = vmatprep.subr.mxu0 0.0
        %747 = vmatpush1.msra.mxu0 0.0
        %748 = vmatprep.subr.mxu0 0.0
        %749 = vmatpush1.msra.mxu0 0.0
        %750 = vmatprep.subr.mxu0 0.0
        %751 = vmatpush1.msra.mxu0 0.0
        %752 = vmatprep.subr.mxu0 0.0
        %753 = vmatpush1.msra.mxu0 0.0
        %754 = vmatprep.subr.mxu0 0.0
        %755 = vmatpush1.msra.mxu0 0.0
        %756 = vmatprep.subr.mxu0 0.0
        %757 = vmatpush1.msra.mxu0 0.0
        %758 = vmatprep.subr.mxu0 0.0
        %759 = vmatpush1.msra.mxu0 0.0
        %760 = vmatprep.subr.mxu0 0.0
        %761 = vmatpush1.msra.mxu0 0.0
        %762 = vmatprep.subr.mxu0 0.0
        %763 = vmatpush1.msra.mxu0 0.0
        %764 = vmatprep.subr.mxu0 0.0
        %765 = vmatpush1.msra.mxu0 0.0
        %766 = vmatprep.subr.mxu0 0.0
        %767 = vmatpush1.msra.mxu0 0.0
        %768 = vmatprep.subr.mxu0 0.0
        %769 = vmatpush1.msra.mxu0 0.0
        %770 = vmatprep.subr.mxu0 0.0
        %771 = vmatpush1.msra.mxu0 0.0
        %772 = vmatprep.subr.mxu0 0.0
        %773 = vmatpush1.msra.mxu0 0.0
        %774 = vmatprep.subr.mxu0 0.0
        %775 = vmatpush1.msra.mxu0 0.0
        %776 = vmatprep.subr.mxu0 0.0
        %777 = vmatpush1.msra.mxu0 0.0
        %778 = vmatprep.subr.mxu0 0.0
        %779 = vmatpush1.msra.mxu0 0.0
        %780 = vmatprep.subr.mxu0 0.0
        %781 = vmatpush1.msra.mxu0 0.0
        %782 = vmatprep.subr.mxu0 0.0
        %783 = vmatpush1.msra.mxu0 0.0
        %784 = vmatprep.subr.mxu0 0.0
        %785 = vmatpush1.msra.mxu0 0.0
        %786 = vmatprep.subr.mxu0 0.0
        %787 = vmatpush1.msra.mxu0 0.0
        %788 = vmatprep.subr.mxu0 0.0
        %789 = vmatpush1.msra.mxu0 0.0
        %790 = vmatprep.subr.mxu0 0.0
        %791 = vmatpush1.msra.mxu0 0.0
        %792 = vmatprep.subr.mxu0 0.0
        %793 = vmatpush1.msra.mxu0 0.0
        %794 = vmatprep.subr.mxu0 0.0
        %795 = vmatpush1.msra.mxu0 0.0
        %796 = vmatprep.subr.mxu0 0.0
        %797 = vmatpush1.msra.mxu0 0.0
        %798 = vmatprep.mubr.f32.mxu0 0.0
        %v799 = vand.u32 %v268, 4294901760
        %800 = vmatmul.mubr.f32.gmra.mrb[0].mxu0 %v799
        %v801 = vpop.f32.mrb[0].mxu0
        %v802 = vadd.f32 %v719, %v801
        %v803 = vpop.f32.mrb[0].mxu0
        %v804 = vadd.f32 %v721, %v803
        %805 = vmatprep.mubr.f32.mxu0 0.0
        %v806 = vand.u32 %v271, 4294901760
        %807 = vmatmul.mubr.f32.gmra.mrb[0].mxu0 %v806
        %v808 = vpop.f32.mrb[0].mxu0
        %v809 = vadd.f32 %v726, %v808
        %v810 = vpop.f32.mrb[0].mxu0
        %v811 = vadd.f32 %v728, %v810
        %812 = vdwg.mxu0
        %v813 = vand.u32 %v253, 4294901760
        %814 = vmatprep.subr.mxu0 %v813
        %v815 = vand.u32 %v252, 4294901760
        %816 = vmatpush1.msra.mxu0 %v815
        %v817 = vand.u32 %v261, 4294901760
        %818 = vmatprep.subr.mxu0 %v817
        %v819 = vand.u32 %v260, 4294901760
        %820 = vmatpush1.msra.mxu0 %v819
        %821 = vmatprep.subr.mxu0 0.0
        %822 = vmatpush1.msra.mxu0 0.0
        %823 = vmatprep.subr.mxu0 0.0
        %824 = vmatpush1.msra.mxu0 0.0
        %825 = vmatprep.subr.mxu0 0.0
        %826 = vmatpush1.msra.mxu0 0.0
        %827 = vmatprep.subr.mxu0 0.0
        %828 = vmatpush1.msra.mxu0 0.0
        %829 = vmatprep.subr.mxu0 0.0
        %830 = vmatpush1.msra.mxu0 0.0
        %831 = vmatprep.subr.mxu0 0.0
        %832 = vmatpush1.msra.mxu0 0.0
        %833 = vmatprep.subr.mxu0 0.0
        %834 = vmatpush1.msra.mxu0 0.0
        %835 = vmatprep.subr.mxu0 0.0
        %836 = vmatpush1.msra.mxu0 0.0
        %837 = vmatprep.subr.mxu0 0.0
        %838 = vmatpush1.msra.mxu0 0.0
        %839 = vmatprep.subr.mxu0 0.0
        %840 = vmatpush1.msra.mxu0 0.0
        %841 = vmatprep.subr.mxu0 0.0
        %842 = vmatpush1.msra.mxu0 0.0
        %843 = vmatprep.subr.mxu0 0.0
        %844 = vmatpush1.msra.mxu0 0.0
        %845 = vmatprep.subr.mxu0 0.0
        %846 = vmatpush1.msra.mxu0 0.0
        %847 = vmatprep.subr.mxu0 0.0
        %848 = vmatpush1.msra.mxu0 0.0
        %849 = vmatprep.subr.mxu0 0.0
        %850 = vmatpush1.msra.mxu0 0.0
        %851 = vmatprep.subr.mxu0 0.0
        %852 = vmatpush1.msra.mxu0 0.0
        %853 = vmatprep.subr.mxu0 0.0
        %854 = vmatpush1.msra.mxu0 0.0
        %855 = vmatprep.subr.mxu0 0.0
        %856 = vmatpush1.msra.mxu0 0.0
        %857 = vmatprep.subr.mxu0 0.0
        %858 = vmatpush1.msra.mxu0 0.0
        %859 = vmatprep.subr.mxu0 0.0
        %860 = vmatpush1.msra.mxu0 0.0
        %861 = vmatprep.subr.mxu0 0.0
        %862 = vmatpush1.msra.mxu0 0.0
        %863 = vmatprep.subr.mxu0 0.0
        %864 = vmatpush1.msra.mxu0 0.0
        %865 = vmatprep.subr.mxu0 0.0
        %866 = vmatpush1.msra.mxu0 0.0
        %867 = vmatprep.subr.mxu0 0.0
        %868 = vmatpush1.msra.mxu0 0.0
        %869 = vmatprep.subr.mxu0 0.0
        %870 = vmatpush1.msra.mxu0 0.0
        %871 = vmatprep.subr.mxu0 0.0
        %872 = vmatpush1.msra.mxu0 0.0
        %873 = vmatprep.subr.mxu0 0.0
        %874 = vmatpush1.msra.mxu0 0.0
        %875 = vmatprep.subr.mxu0 0.0
        %876 = vmatpush1.msra.mxu0 0.0
        %877 = vmatprep.subr.mxu0 0.0
        %878 = vmatpush1.msra.mxu0 0.0
        %879 = vmatprep.subr.mxu0 0.0
        %880 = vmatpush1.msra.mxu0 0.0
        %881 = vmatprep.mubr.f32.mxu0 0.0
        %v882 = vand.u32 %v268, 4294901760
        %v883 = vsub.f32 %v268, %v882
        %v884 = vand.u32 %v883, 4294901760
        %v885 = vsub.f32 %v883, %v884
        %v886 = vand.u32 %v885, 4294901760
        %887 = vmatmul.mubr.f32.gmra.mrb[0].mxu0 %v886
        %v888 = vpop.f32.mrb[0].mxu0
        %v889 = vadd.f32 0.0, %v888
        %v890 = vpop.f32.mrb[0].mxu0
        %v891 = vadd.f32 0.0, %v890
        %892 = vmatprep.mubr.f32.mxu0 0.0
        %v893 = vand.u32 %v271, 4294901760
        %v894 = vsub.f32 %v271, %v893
        %v895 = vand.u32 %v894, 4294901760
        %v896 = vsub.f32 %v894, %v895
        %v897 = vand.u32 %v896, 4294901760
        %898 = vmatmul.mubr.f32.gmra.mrb[0].mxu0 %v897
        %v899 = vpop.f32.mrb[0].mxu0
        %v900 = vadd.f32 0.0, %v899
        %v901 = vpop.f32.mrb[0].mxu0
        %v902 = vadd.f32 0.0, %v901
        %903 = vdwg.mxu0
        %v904 = vand.u32 %v253, 4294901760
        %v905 = vsub.f32 %v253, %v904
        %v906 = vand.u32 %v905, 4294901760
        %v907 = vsub.f32 %v905, %v906
        %v908 = vand.u32 %v907, 4294901760
        %909 = vmatprep.subr.mxu0 %v908
        %v910 = vand.u32 %v252, 4294901760
        %v911 = vsub.f32 %v252, %v910
        %v912 = vand.u32 %v911, 4294901760
        %v913 = vsub.f32 %v911, %v912
        %v914 = vand.u32 %v913, 4294901760
        %915 = vmatpush1.msra.mxu0 %v914
        %v916 = vand.u32 %v261, 4294901760
        %v917 = vsub.f32 %v261, %v916
        %v918 = vand.u32 %v917, 4294901760
        %v919 = vsub.f32 %v917, %v918
        %v920 = vand.u32 %v919, 4294901760
        %921 = vmatprep.subr.mxu0 %v920
        %v922 = vand.u32 %v260, 4294901760
        %v923 = vsub.f32 %v260, %v922
        %v924 = vand.u32 %v923, 4294901760
        %v925 = vsub.f32 %v923, %v924
        %v926 = vand.u32 %v925, 4294901760
        %927 = vmatpush1.msra.mxu0 %v926
        %928 = vmatprep.subr.mxu0 0.0
        %929 = vmatpush1.msra.mxu0 0.0
        %930 = vmatprep.subr.mxu0 0.0
        %931 = vmatpush1.msra.mxu0 0.0
        %932 = vmatprep.subr.mxu0 0.0
        %933 = vmatpush1.msra.mxu0 0.0
        %934 = vmatprep.subr.mxu0 0.0
        %935 = vmatpush1.msra.mxu0 0.0
        %936 = vmatprep.subr.mxu0 0.0
        %937 = vmatpush1.msra.mxu0 0.0
        %938 = vmatprep.subr.mxu0 0.0
        %939 = vmatpush1.msra.mxu0 0.0
        %940 = vmatprep.subr.mxu0 0.0
        %941 = vmatpush1.msra.mxu0 0.0
        %942 = vmatprep.subr.mxu0 0.0
        %943 = vmatpush1.msra.mxu0 0.0
        %944 = vmatprep.subr.mxu0 0.0
        %945 = vmatpush1.msra.mxu0 0.0
        %946 = vmatprep.subr.mxu0 0.0
        %947 = vmatpush1.msra.mxu0 0.0
        %948 = vmatprep.subr.mxu0 0.0
        %949 = vmatpush1.msra.mxu0 0.0
        %950 = vmatprep.subr.mxu0 0.0
        %951 = vmatpush1.msra.mxu0 0.0
        %952 = vmatprep.subr.mxu0 0.0
        %953 = vmatpush1.msra.mxu0 0.0
        %954 = vmatprep.subr.mxu0 0.0
        %955 = vmatpush1.msra.mxu0 0.0
        %956 = vmatprep.subr.mxu0 0.0
        %957 = vmatpush1.msra.mxu0 0.0
        %958 = vmatprep.subr.mxu0 0.0
        %959 = vmatpush1.msra.mxu0 0.0
        %960 = vmatprep.subr.mxu0 0.0
        %961 = vmatpush1.msra.mxu0 0.0
        %962 = vmatprep.subr.mxu0 0.0
        %963 = vmatpush1.msra.mxu0 0.0
        %964 = vmatprep.subr.mxu0 0.0
        %965 = vmatpush1.msra.mxu0 0.0
        %966 = vmatprep.subr.mxu0 0.0
        %967 = vmatpush1.msra.mxu0 0.0
        %968 = vmatprep.subr.mxu0 0.0
        %969 = vmatpush1.msra.mxu0 0.0
        %970 = vmatprep.subr.mxu0 0.0
        %971 = vmatpush1.msra.mxu0 0.0
        %972 = vmatprep.subr.mxu0 0.0
        %973 = vmatpush1.msra.mxu0 0.0
        %974 = vmatprep.subr.mxu0 0.0
        %975 = vmatpush1.msra.mxu0 0.0
        %976 = vmatprep.subr.mxu0 0.0
        %977 = vmatpush1.msra.mxu0 0.0
        %978 = vmatprep.subr.mxu0 0.0
        %979 = vmatpush1.msra.mxu0 0.0
        %980 = vmatprep.subr.mxu0 0.0
        %981 = vmatpush1.msra.mxu0 0.0
        %982 = vmatprep.subr.mxu0 0.0
        %983 = vmatpush1.msra.mxu0 0.0
        %984 = vmatprep.subr.mxu0 0.0
        %985 = vmatpush1.msra.mxu0 0.0
        %986 = vmatprep.subr.mxu0 0.0
        %987 = vmatpush1.msra.mxu0 0.0
        %988 = vmatprep.mubr.f32.mxu0 0.0
        %v989 = vand.u32 %v268, 4294901760
        %990 = vmatmul.mubr.f32.gmra.mrb[0].mxu0 %v989
        %v991 = vpop.f32.mrb[0].mxu0
        %v992 = vadd.f32 %v889, %v991
        %v993 = vpop.f32.mrb[0].mxu0
        %v994 = vadd.f32 %v891, %v993
        %995 = vmatprep.mubr.f32.mxu0 0.0
        %v996 = vand.u32 %v271, 4294901760
        %997 = vmatmul.mubr.f32.gmra.mrb[0].mxu0 %v996
        %v998 = vpop.f32.mrb[0].mxu0
        %v999 = vadd.f32 %v900, %v998
        %v1000 = vpop.f32.mrb[0].mxu0
        %v1001 = vadd.f32 %v902, %v1000
        %1002 = vdwg.mxu0
        %v1003 = vand.u32 %v253, 4294901760
        %v1004 = vsub.f32 %v253, %v1003
        %1005 = vmatprep.subr.mxu0 %v1004
        %v1006 = vand.u32 %v252, 4294901760
        %v1007 = vsub.f32 %v252, %v1006
        %1008 = vmatpush1.msra.mxu0 %v1007
        %v1009 = vand.u32 %v261, 4294901760
        %v1010 = vsub.f32 %v261, %v1009
        %1011 = vmatprep.subr.mxu0 %v1010
        %v1012 = vand.u32 %v260, 4294901760
        %v1013 = vsub.f32 %v260, %v1012
        %1014 = vmatpush1.msra.mxu0 %v1013
        %1015 = vmatprep.subr.mxu0 0.0
        %1016 = vmatpush1.msra.mxu0 0.0
        %1017 = vmatprep.subr.mxu0 0.0
        %1018 = vmatpush1.msra.mxu0 0.0
        %1019 = vmatprep.subr.mxu0 0.0
        %1020 = vmatpush1.msra.mxu0 0.0
        %1021 = vmatprep.subr.mxu0 0.0
        %1022 = vmatpush1.msra.mxu0 0.0
        %1023 = vmatprep.subr.mxu0 0.0
        %1024 = vmatpush1.msra.mxu0 0.0
        %1025 = vmatprep.subr.mxu0 0.0
        %1026 = vmatpush1.msra.mxu0 0.0
        %1027 = vmatprep.subr.mxu0 0.0
        %1028 = vmatpush1.msra.mxu0 0.0
        %1029 = vmatprep.subr.mxu0 0.0
        %1030 = vmatpush1.msra.mxu0 0.0
        %1031 = vmatprep.subr.mxu0 0.0
        %1032 = vmatpush1.msra.mxu0 0.0
        %1033 = vmatprep.subr.mxu0 0.0
        %1034 = vmatpush1.msra.mxu0 0.0
        %1035 = vmatprep.subr.mxu0 0.0
        %1036 = vmatpush1.msra.mxu0 0.0
        %1037 = vmatprep.subr.mxu0 0.0
        %1038 = vmatpush1.msra.mxu0 0.0
        %1039 = vmatprep.subr.mxu0 0.0
        %1040 = vmatpush1.msra.mxu0 0.0
        %1041 = vmatprep.subr.mxu0 0.0
        %1042 = vmatpush1.msra.mxu0 0.0
        %1043 = vmatprep.subr.mxu0 0.0
        %1044 = vmatpush1.msra.mxu0 0.0
        %1045 = vmatprep.subr.mxu0 0.0
        %1046 = vmatpush1.msra.mxu0 0.0
        %1047 = vmatprep.subr.mxu0 0.0
        %1048 = vmatpush1.msra.mxu0 0.0
        %1049 = vmatprep.subr.mxu0 0.0
        %1050 = vmatpush1.msra.mxu0 0.0
        %1051 = vmatprep.subr.mxu0 0.0
        %1052 = vmatpush1.msra.mxu0 0.0
        %1053 = vmatprep.subr.mxu0 0.0
        %1054 = vmatpush1.msra.mxu0 0.0
        %1055 = vmatprep.subr.mxu0 0.0
        %1056 = vmatpush1.msra.mxu0 0.0
        %1057 = vmatprep.subr.mxu0 0.0
        %1058 = vmatpush1.msra.mxu0 0.0
        %1059 = vmatprep.subr.mxu0 0.0
        %1060 = vmatpush1.msra.mxu0 0.0
        %1061 = vmatprep.subr.mxu0 0.0
        %1062 = vmatpush1.msra.mxu0 0.0
        %1063 = vmatprep.subr.mxu0 0.0
        %1064 = vmatpush1.msra.mxu0 0.0
        %1065 = vmatprep.subr.mxu0 0.0
        %1066 = vmatpush1.msra.mxu0 0.0
        %1067 = vmatprep.subr.mxu0 0.0
        %1068 = vmatpush1.msra.mxu0 0.0
        %1069 = vmatprep.subr.mxu0 0.0
        %1070 = vmatpush1.msra.mxu0 0.0
        %1071 = vmatprep.subr.mxu0 0.0
        %1072 = vmatpush1.msra.mxu0 0.0
        %1073 = vmatprep.subr.mxu0 0.0
        %1074 = vmatpush1.msra.mxu0 0.0
        %1075 = vmatprep.mubr.f32.mxu0 0.0
        %v1076 = vand.u32 %v268, 4294901760
        %v1077 = vsub.f32 %v268, %v1076
        %1078 = vmatmul.mubr.f32.gmra.mrb[0].mxu0 %v1077
        %v1079 = vpop.f32.mrb[0].mxu0
        %v1080 = vadd.f32 %v992, %v1079
        %v1081 = vpop.f32.mrb[0].mxu0
        %v1082 = vadd.f32 %v994, %v1081
        %1083 = vmatprep.mubr.f32.mxu0 0.0
        %v1084 = vand.u32 %v271, 4294901760
        %v1085 = vsub.f32 %v271, %v1084
        %1086 = vmatmul.mubr.f32.gmra.mrb[0].mxu0 %v1085
        %v1087 = vpop.f32.mrb[0].mxu0
        %v1088 = vadd.f32 %v999, %v1087
        %v1089 = vpop.f32.mrb[0].mxu0
        %v1090 = vadd.f32 %v1001, %v1089
        %1091 = vdwg.mxu0
        %v1092 = vand.u32 %v253, 4294901760
        %1093 = vmatprep.subr.mxu0 %v1092
        %v1094 = vand.u32 %v252, 4294901760
        %1095 = vmatpush1.msra.mxu0 %v1094
        %v1096 = vand.u32 %v261, 4294901760
        %1097 = vmatprep.subr.mxu0 %v1096
        %v1098 = vand.u32 %v260, 4294901760
        %1099 = vmatpush1.msra.mxu0 %v1098
        %1100 = vmatprep.subr.mxu0 0.0
        %1101 = vmatpush1.msra.mxu0 0.0
        %1102 = vmatprep.subr.mxu0 0.0
        %1103 = vmatpush1.msra.mxu0 0.0
        %1104 = vmatprep.subr.mxu0 0.0
        %1105 = vmatpush1.msra.mxu0 0.0
        %1106 = vmatprep.subr.mxu0 0.0
        %1107 = vmatpush1.msra.mxu0 0.0
        %1108 = vmatprep.subr.mxu0 0.0
        %1109 = vmatpush1.msra.mxu0 0.0
        %1110 = vmatprep.subr.mxu0 0.0
        %1111 = vmatpush1.msra.mxu0 0.0
        %1112 = vmatprep.subr.mxu0 0.0
        %1113 = vmatpush1.msra.mxu0 0.0
        %1114 = vmatprep.subr.mxu0 0.0
        %1115 = vmatpush1.msra.mxu0 0.0
        %1116 = vmatprep.subr.mxu0 0.0
        %1117 = vmatpush1.msra.mxu0 0.0
        %1118 = vmatprep.subr.mxu0 0.0
        %1119 = vmatpush1.msra.mxu0 0.0
        %1120 = vmatprep.subr.mxu0 0.0
        %1121 = vmatpush1.msra.mxu0 0.0
        %1122 = vmatprep.subr.mxu0 0.0
        %1123 = vmatpush1.msra.mxu0 0.0
        %1124 = vmatprep.subr.mxu0 0.0
        %1125 = vmatpush1.msra.mxu0 0.0
        %1126 = vmatprep.subr.mxu0 0.0
        %1127 = vmatpush1.msra.mxu0 0.0
        %1128 = vmatprep.subr.mxu0 0.0
        %1129 = vmatpush1.msra.mxu0 0.0
        %1130 = vmatprep.subr.mxu0 0.0
        %1131 = vmatpush1.msra.mxu0 0.0
        %1132 = vmatprep.subr.mxu0 0.0
        %1133 = vmatpush1.msra.mxu0 0.0
        %1134 = vmatprep.subr.mxu0 0.0
        %1135 = vmatpush1.msra.mxu0 0.0
        %1136 = vmatprep.subr.mxu0 0.0
        %1137 = vmatpush1.msra.mxu0 0.0
        %1138 = vmatprep.subr.mxu0 0.0
        %1139 = vmatpush1.msra.mxu0 0.0
        %1140 = vmatprep.subr.mxu0 0.0
        %1141 = vmatpush1.msra.mxu0 0.0
        %1142 = vmatprep.subr.mxu0 0.0
        %1143 = vmatpush1.msra.mxu0 0.0
        %1144 = vmatprep.subr.mxu0 0.0
        %1145 = vmatpush1.msra.mxu0 0.0
        %1146 = vmatprep.subr.mxu0 0.0
        %1147 = vmatpush1.msra.mxu0 0.0
        %1148 = vmatprep.subr.mxu0 0.0
        %1149 = vmatpush1.msra.mxu0 0.0
        %1150 = vmatprep.subr.mxu0 0.0
        %1151 = vmatpush1.msra.mxu0 0.0
        %1152 = vmatprep.subr.mxu0 0.0
        %1153 = vmatpush1.msra.mxu0 0.0
        %1154 = vmatprep.subr.mxu0 0.0
        %1155 = vmatpush1.msra.mxu0 0.0
        %1156 = vmatprep.subr.mxu0 0.0
        %1157 = vmatpush1.msra.mxu0 0.0
        %1158 = vmatprep.subr.mxu0 0.0
        %1159 = vmatpush1.msra.mxu0 0.0
        %1160 = vmatprep.mubr.f32.mxu0 0.0
        %v1161 = vand.u32 %v268, 4294901760
        %v1162 = vsub.f32 %v268, %v1161
        %v1163 = vand.u32 %v1162, 4294901760
        %1164 = vmatmul.mubr.f32.gmra.mrb[0].mxu0 %v1163
        %v1165 = vpop.f32.mrb[0].mxu0
        %v1166 = vadd.f32 %v1080, %v1165
        %v1167 = vpop.f32.mrb[0].mxu0
        %v1168 = vadd.f32 %v1082, %v1167
        %1169 = vmatprep.mubr.f32.mxu0 0.0
        %v1170 = vand.u32 %v271, 4294901760
        %v1171 = vsub.f32 %v271, %v1170
        %v1172 = vand.u32 %v1171, 4294901760
        %1173 = vmatmul.mubr.f32.gmra.mrb[0].mxu0 %v1172
        %v1174 = vpop.f32.mrb[0].mxu0
        %v1175 = vadd.f32 %v1088, %v1174
        %v1176 = vpop.f32.mrb[0].mxu0
        %v1177 = vadd.f32 %v1090, %v1176
        %1178 = vdwg.mxu0
        %v1179 = vand.u32 %v253, 4294901760
        %v1180 = vsub.f32 %v253, %v1179
        %v1181 = vand.u32 %v1180, 4294901760
        %1182 = vmatprep.subr.mxu0 %v1181
        %v1183 = vand.u32 %v252, 4294901760
        %v1184 = vsub.f32 %v252, %v1183
        %v1185 = vand.u32 %v1184, 4294901760
        %1186 = vmatpush1.msra.mxu0 %v1185
        %v1187 = vand.u32 %v261, 4294901760
        %v1188 = vsub.f32 %v261, %v1187
        %v1189 = vand.u32 %v1188, 4294901760
        %1190 = vmatprep.subr.mxu0 %v1189
        %v1191 = vand.u32 %v260, 4294901760
        %v1192 = vsub.f32 %v260, %v1191
        %v1193 = vand.u32 %v1192, 4294901760
        %1194 = vmatpush1.msra.mxu0 %v1193
        %1195 = vmatprep.subr.mxu0 0.0
        %1196 = vmatpush1.msra.mxu0 0.0
        %1197 = vmatprep.subr.mxu0 0.0
        %1198 = vmatpush1.msra.mxu0 0.0
        %1199 = vmatprep.subr.mxu0 0.0
        %1200 = vmatpush1.msra.mxu0 0.0
        %1201 = vmatprep.subr.mxu0 0.0
        %1202 = vmatpush1.msra.mxu0 0.0
        %1203 = vmatprep.subr.mxu0 0.0
        %1204 = vmatpush1.msra.mxu0 0.0
        %1205 = vmatprep.subr.mxu0 0.0
        %1206 = vmatpush1.msra.mxu0 0.0
        %1207 = vmatprep.subr.mxu0 0.0
        %1208 = vmatpush1.msra.mxu0 0.0
        %1209 = vmatprep.subr.mxu0 0.0
        %1210 = vmatpush1.msra.mxu0 0.0
        %1211 = vmatprep.subr.mxu0 0.0
        %1212 = vmatpush1.msra.mxu0 0.0
        %1213 = vmatprep.subr.mxu0 0.0
        %1214 = vmatpush1.msra.mxu0 0.0
        %1215 = vmatprep.subr.mxu0 0.0
        %1216 = vmatpush1.msra.mxu0 0.0
        %1217 = vmatprep.subr.mxu0 0.0
        %1218 = vmatpush1.msra.mxu0 0.0
        %1219 = vmatprep.subr.mxu0 0.0
        %1220 = vmatpush1.msra.mxu0 0.0
        %1221 = vmatprep.subr.mxu0 0.0
        %1222 = vmatpush1.msra.mxu0 0.0
        %1223 = vmatprep.subr.mxu0 0.0
        %1224 = vmatpush1.msra.mxu0 0.0
        %1225 = vmatprep.subr.mxu0 0.0
        %1226 = vmatpush1.msra.mxu0 0.0
        %1227 = vmatprep.subr.mxu0 0.0
        %1228 = vmatpush1.msra.mxu0 0.0
        %1229 = vmatprep.subr.mxu0 0.0
        %1230 = vmatpush1.msra.mxu0 0.0
        %1231 = vmatprep.subr.mxu0 0.0
        %1232 = vmatpush1.msra.mxu0 0.0
        %1233 = vmatprep.subr.mxu0 0.0
        %1234 = vmatpush1.msra.mxu0 0.0
        %1235 = vmatprep.subr.mxu0 0.0
        %1236 = vmatpush1.msra.mxu0 0.0
        %1237 = vmatprep.subr.mxu0 0.0
        %1238 = vmatpush1.msra.mxu0 0.0
        %1239 = vmatprep.subr.mxu0 0.0
        %1240 = vmatpush1.msra.mxu0 0.0
        %1241 = vmatprep.subr.mxu0 0.0
        %1242 = vmatpush1.msra.mxu0 0.0
        %1243 = vmatprep.subr.mxu0 0.0
        %1244 = vmatpush1.msra.mxu0 0.0
        %1245 = vmatprep.subr.mxu0 0.0
        %1246 = vmatpush1.msra.mxu0 0.0
        %1247 = vmatprep.subr.mxu0 0.0
        %1248 = vmatpush1.msra.mxu0 0.0
        %1249 = vmatprep.subr.mxu0 0.0
        %1250 = vmatpush1.msra.mxu0 0.0
        %1251 = vmatprep.subr.mxu0 0.0
        %1252 = vmatpush1.msra.mxu0 0.0
        %1253 = vmatprep.subr.mxu0 0.0
        %1254 = vmatpush1.msra.mxu0 0.0
        %1255 = vmatprep.mubr.f32.mxu0 0.0
        %v1256 = vand.u32 %v268, 4294901760
        %1257 = vmatmul.mubr.f32.gmra.mrb[0].mxu0 %v1256
        %v1258 = vpop.f32.mrb[0].mxu0
        %v1259 = vadd.f32 %v1166, %v1258
        %v1260 = vpop.f32.mrb[0].mxu0
        %v1261 = vadd.f32 %v1168, %v1260
        %1262 = vmatprep.mubr.f32.mxu0 0.0
        %v1263 = vand.u32 %v271, 4294901760
        %1264 = vmatmul.mubr.f32.gmra.mrb[0].mxu0 %v1263
        %v1265 = vpop.f32.mrb[0].mxu0
        %v1266 = vadd.f32 %v1175, %v1265
        %v1267 = vpop.f32.mrb[0].mxu0
        %v1268 = vadd.f32 %v1177, %v1267
        %1269 = vdwg.mxu0
        %v1270 = vand.u32 %v253, 4294901760
        %1271 = vmatprep.subr.mxu0 %v1270
        %v1272 = vand.u32 %v252, 4294901760
        %1273 = vmatpush1.msra.mxu0 %v1272
        %v1274 = vand.u32 %v261, 4294901760
        %1275 = vmatprep.subr.mxu0 %v1274
        %v1276 = vand.u32 %v260, 4294901760
        %1277 = vmatpush1.msra.mxu0 %v1276
        %1278 = vmatprep.subr.mxu0 0.0
        %1279 = vmatpush1.msra.mxu0 0.0
        %1280 = vmatprep.subr.mxu0 0.0
        %1281 = vmatpush1.msra.mxu0 0.0
        %1282 = vmatprep.subr.mxu0 0.0
        %1283 = vmatpush1.msra.mxu0 0.0
        %1284 = vmatprep.subr.mxu0 0.0
        %1285 = vmatpush1.msra.mxu0 0.0
        %1286 = vmatprep.subr.mxu0 0.0
        %1287 = vmatpush1.msra.mxu0 0.0
        %1288 = vmatprep.subr.mxu0 0.0
        %1289 = vmatpush1.msra.mxu0 0.0
        %1290 = vmatprep.subr.mxu0 0.0
        %1291 = vmatpush1.msra.mxu0 0.0
        %1292 = vmatprep.subr.mxu0 0.0
        %1293 = vmatpush1.msra.mxu0 0.0
        %1294 = vmatprep.subr.mxu0 0.0
        %1295 = vmatpush1.msra.mxu0 0.0
        %1296 = vmatprep.subr.mxu0 0.0
        %1297 = vmatpush1.msra.mxu0 0.0
        %1298 = vmatprep.subr.mxu0 0.0
        %1299 = vmatpush1.msra.mxu0 0.0
        %1300 = vmatprep.subr.mxu0 0.0
        %1301 = vmatpush1.msra.mxu0 0.0
        %1302 = vmatprep.subr.mxu0 0.0
        %1303 = vmatpush1.msra.mxu0 0.0
        %1304 = vmatprep.subr.mxu0 0.0
        %1305 = vmatpush1.msra.mxu0 0.0
        %1306 = vmatprep.subr.mxu0 0.0
        %1307 = vmatpush1.msra.mxu0 0.0
        %1308 = vmatprep.subr.mxu0 0.0
        %1309 = vmatpush1.msra.mxu0 0.0
        %1310 = vmatprep.subr.mxu0 0.0
        %1311 = vmatpush1.msra.mxu0 0.0
        %1312 = vmatprep.subr.mxu0 0.0
        %1313 = vmatpush1.msra.mxu0 0.0
        %1314 = vmatprep.subr.mxu0 0.0
        %1315 = vmatpush1.msra.mxu0 0.0
        %1316 = vmatprep.subr.mxu0 0.0
        %1317 = vmatpush1.msra.mxu0 0.0
        %1318 = vmatprep.subr.mxu0 0.0
        %1319 = vmatpush1.msra.mxu0 0.0
        %1320 = vmatprep.subr.mxu0 0.0
        %1321 = vmatpush1.msra.mxu0 0.0
        %1322 = vmatprep.subr.mxu0 0.0
        %1323 = vmatpush1.msra.mxu0 0.0
        %1324 = vmatprep.subr.mxu0 0.0
        %1325 = vmatpush1.msra.mxu0 0.0
        %1326 = vmatprep.subr.mxu0 0.0
        %1327 = vmatpush1.msra.mxu0 0.0
        %1328 = vmatprep.subr.mxu0 0.0
        %1329 = vmatpush1.msra.mxu0 0.0
        %1330 = vmatprep.subr.mxu0 0.0
        %1331 = vmatpush1.msra.mxu0 0.0
        %1332 = vmatprep.subr.mxu0 0.0
        %1333 = vmatpush1.msra.mxu0 0.0
        %1334 = vmatprep.subr.mxu0 0.0
        %1335 = vmatpush1.msra.mxu0 0.0
        %1336 = vmatprep.subr.mxu0 0.0
        %1337 = vmatpush1.msra.mxu0 0.0
        %1338 = vmatprep.mubr.f32.mxu0 0.0
        %v1339 = vand.u32 %v268, 4294901760
        %1340 = vmatmul.mubr.f32.gmra.mrb[0].mxu0 %v1339
        %v1341 = vpop.f32.mrb[0].mxu0
        %v1342 = vadd.f32 %v1259, %v1341
        %v1343 = vpop.f32.mrb[0].mxu0
        %v1344 = vadd.f32 %v1261, %v1343
        %1345 = vmatprep.mubr.f32.mxu0 0.0
        %v1346 = vand.u32 %v271, 4294901760
        %1347 = vmatmul.mubr.f32.gmra.mrb[0].mxu0 %v1346
        %v1348 = vpop.f32.mrb[0].mxu0
        %v1349 = vadd.f32 %v1266, %v1348
        %v1350 = vpop.f32.mrb[0].mxu0
        %v1351 = vadd.f32 %v1268, %v1350
        %1352 = vdwg.mxu0
        %v1353 = vand.u32 %v255, 4294901760
        %1354 = vmatprep.subr.mxu0 %v1353
        %v1355 = vand.u32 %v254, 4294901760
        %1356 = vmatpush1.msra.mxu0 %v1355
        %v1357 = vand.u32 %v263, 4294901760
        %1358 = vmatprep.subr.mxu0 %v1357
        %v1359 = vand.u32 %v262, 4294901760
        %1360 = vmatpush1.msra.mxu0 %v1359
        %1361 = vmatprep.subr.mxu0 0.0
        %1362 = vmatpush1.msra.mxu0 0.0
        %1363 = vmatprep.subr.mxu0 0.0
        %1364 = vmatpush1.msra.mxu0 0.0
        %1365 = vmatprep.subr.mxu0 0.0
        %1366 = vmatpush1.msra.mxu0 0.0
        %1367 = vmatprep.subr.mxu0 0.0
        %1368 = vmatpush1.msra.mxu0 0.0
        %1369 = vmatprep.subr.mxu0 0.0
        %1370 = vmatpush1.msra.mxu0 0.0
        %1371 = vmatprep.subr.mxu0 0.0
        %1372 = vmatpush1.msra.mxu0 0.0
        %1373 = vmatprep.subr.mxu0 0.0
        %1374 = vmatpush1.msra.mxu0 0.0
        %1375 = vmatprep.subr.mxu0 0.0
        %1376 = vmatpush1.msra.mxu0 0.0
        %1377 = vmatprep.subr.mxu0 0.0
        %1378 = vmatpush1.msra.mxu0 0.0
        %1379 = vmatprep.subr.mxu0 0.0
        %1380 = vmatpush1.msra.mxu0 0.0
        %1381 = vmatprep.subr.mxu0 0.0
        %1382 = vmatpush1.msra.mxu0 0.0
        %1383 = vmatprep.subr.mxu0 0.0
        %1384 = vmatpush1.msra.mxu0 0.0
        %1385 = vmatprep.subr.mxu0 0.0
        %1386 = vmatpush1.msra.mxu0 0.0
        %1387 = vmatprep.subr.mxu0 0.0
        %1388 = vmatpush1.msra.mxu0 0.0
        %1389 = vmatprep.subr.mxu0 0.0
        %1390 = vmatpush1.msra.mxu0 0.0
        %1391 = vmatprep.subr.mxu0 0.0
        %1392 = vmatpush1.msra.mxu0 0.0
        %1393 = vmatprep.subr.mxu0 0.0
        %1394 = vmatpush1.msra.mxu0 0.0
        %1395 = vmatprep.subr.mxu0 0.0
        %1396 = vmatpush1.msra.mxu0 0.0
        %1397 = vmatprep.subr.mxu0 0.0
        %1398 = vmatpush1.msra.mxu0 0.0
        %1399 = vmatprep.subr.mxu0 0.0
        %1400 = vmatpush1.msra.mxu0 0.0
        %1401 = vmatprep.subr.mxu0 0.0
        %1402 = vmatpush1.msra.mxu0 0.0
        %1403 = vmatprep.subr.mxu0 0.0
        %1404 = vmatpush1.msra.mxu0 0.0
        %1405 = vmatprep.subr.mxu0 0.0
        %1406 = vmatpush1.msra.mxu0 0.0
        %1407 = vmatprep.subr.mxu0 0.0
        %1408 = vmatpush1.msra.mxu0 0.0
        %1409 = vmatprep.subr.mxu0 0.0
        %1410 = vmatpush1.msra.mxu0 0.0
        %1411 = vmatprep.subr.mxu0 0.0
        %1412 = vmatpush1.msra.mxu0 0.0
        %1413 = vmatprep.subr.mxu0 0.0
        %1414 = vmatpush1.msra.mxu0 0.0
        %1415 = vmatprep.subr.mxu0 0.0
        %1416 = vmatpush1.msra.mxu0 0.0
        %1417 = vmatprep.subr.mxu0 0.0
        %1418 = vmatpush1.msra.mxu0 0.0
        %1419 = vmatprep.subr.mxu0 0.0
        %1420 = vmatpush1.msra.mxu0 0.0
        %1421 = vmatprep.mubr.f32.mxu0 0.0
        %v1422 = vand.u32 %v268, 4294901760
        %v1423 = vsub.f32 %v268, %v1422
        %v1424 = vand.u32 %v1423, 4294901760
        %v1425 = vsub.f32 %v1423, %v1424
        %v1426 = vand.u32 %v1425, 4294901760
        %1427 = vmatmul.mubr.f32.gmra.mrb[0].mxu0 %v1426
        %v1428 = vpop.f32.mrb[0].mxu0
        %v1429 = vadd.f32 0.0, %v1428
        %v1430 = vpop.f32.mrb[0].mxu0
        %v1431 = vadd.f32 0.0, %v1430
        %1432 = vmatprep.mubr.f32.mxu0 0.0
        %v1433 = vand.u32 %v271, 4294901760
        %v1434 = vsub.f32 %v271, %v1433
        %v1435 = vand.u32 %v1434, 4294901760
        %v1436 = vsub.f32 %v1434, %v1435
        %v1437 = vand.u32 %v1436, 4294901760
        %1438 = vmatmul.mubr.f32.gmra.mrb[0].mxu0 %v1437
        %v1439 = vpop.f32.mrb[0].mxu0
        %v1440 = vadd.f32 0.0, %v1439
        %v1441 = vpop.f32.mrb[0].mxu0
        %v1442 = vadd.f32 0.0, %v1441
        %1443 = vdwg.mxu0
        %v1444 = vand.u32 %v255, 4294901760
        %v1445 = vsub.f32 %v255, %v1444
        %v1446 = vand.u32 %v1445, 4294901760
        %v1447 = vsub.f32 %v1445, %v1446
        %v1448 = vand.u32 %v1447, 4294901760
        %1449 = vmatprep.subr.mxu0 %v1448
        %v1450 = vand.u32 %v254, 4294901760
        %v1451 = vsub.f32 %v254, %v1450
        %v1452 = vand.u32 %v1451, 4294901760
        %v1453 = vsub.f32 %v1451, %v1452
        %v1454 = vand.u32 %v1453, 4294901760
        %1455 = vmatpush1.msra.mxu0 %v1454
        %v1456 = vand.u32 %v263, 4294901760
        %v1457 = vsub.f32 %v263, %v1456
        %v1458 = vand.u32 %v1457, 4294901760
        %v1459 = vsub.f32 %v1457, %v1458
        %v1460 = vand.u32 %v1459, 4294901760
        %1461 = vmatprep.subr.mxu0 %v1460
        %v1462 = vand.u32 %v262, 4294901760
        %v1463 = vsub.f32 %v262, %v1462
        %v1464 = vand.u32 %v1463, 4294901760
        %v1465 = vsub.f32 %v1463, %v1464
        %v1466 = vand.u32 %v1465, 4294901760
        %1467 = vmatpush1.msra.mxu0 %v1466
        %1468 = vmatprep.subr.mxu0 0.0
        %1469 = vmatpush1.msra.mxu0 0.0
        %1470 = vmatprep.subr.mxu0 0.0
        %1471 = vmatpush1.msra.mxu0 0.0
        %1472 = vmatprep.subr.mxu0 0.0
        %1473 = vmatpush1.msra.mxu0 0.0
        %1474 = vmatprep.subr.mxu0 0.0
        %1475 = vmatpush1.msra.mxu0 0.0
        %1476 = vmatprep.subr.mxu0 0.0
        %1477 = vmatpush1.msra.mxu0 0.0
        %1478 = vmatprep.subr.mxu0 0.0
        %1479 = vmatpush1.msra.mxu0 0.0
        %1480 = vmatprep.subr.mxu0 0.0
        %1481 = vmatpush1.msra.mxu0 0.0
        %1482 = vmatprep.subr.mxu0 0.0
        %1483 = vmatpush1.msra.mxu0 0.0
        %1484 = vmatprep.subr.mxu0 0.0
        %1485 = vmatpush1.msra.mxu0 0.0
        %1486 = vmatprep.subr.mxu0 0.0
        %1487 = vmatpush1.msra.mxu0 0.0
        %1488 = vmatprep.subr.mxu0 0.0
        %1489 = vmatpush1.msra.mxu0 0.0
        %1490 = vmatprep.subr.mxu0 0.0
        %1491 = vmatpush1.msra.mxu0 0.0
        %1492 = vmatprep.subr.mxu0 0.0
        %1493 = vmatpush1.msra.mxu0 0.0
        %1494 = vmatprep.subr.mxu0 0.0
        %1495 = vmatpush1.msra.mxu0 0.0
        %1496 = vmatprep.subr.mxu0 0.0
        %1497 = vmatpush1.msra.mxu0 0.0
        %1498 = vmatprep.subr.mxu0 0.0
        %1499 = vmatpush1.msra.mxu0 0.0
        %1500 = vmatprep.subr.mxu0 0.0
        %1501 = vmatpush1.msra.mxu0 0.0
        %1502 = vmatprep.subr.mxu0 0.0
        %1503 = vmatpush1.msra.mxu0 0.0
        %1504 = vmatprep.subr.mxu0 0.0
        %1505 = vmatpush1.msra.mxu0 0.0
        %1506 = vmatprep.subr.mxu0 0.0
        %1507 = vmatpush1.msra.mxu0 0.0
        %1508 = vmatprep.subr.mxu0 0.0
        %1509 = vmatpush1.msra.mxu0 0.0
        %1510 = vmatprep.subr.mxu0 0.0
        %1511 = vmatpush1.msra.mxu0 0.0
        %1512 = vmatprep.subr.mxu0 0.0
        %1513 = vmatpush1.msra.mxu0 0.0
        %1514 = vmatprep.subr.mxu0 0.0
        %1515 = vmatpush1.msra.mxu0 0.0
        %1516 = vmatprep.subr.mxu0 0.0
        %1517 = vmatpush1.msra.mxu0 0.0
        %1518 = vmatprep.subr.mxu0 0.0
        %1519 = vmatpush1.msra.mxu0 0.0
        %1520 = vmatprep.subr.mxu0 0.0
        %1521 = vmatpush1.msra.mxu0 0.0
        %1522 = vmatprep.subr.mxu0 0.0
        %1523 = vmatpush1.msra.mxu0 0.0
        %1524 = vmatprep.subr.mxu0 0.0
        %1525 = vmatpush1.msra.mxu0 0.0
        %1526 = vmatprep.subr.mxu0 0.0
        %1527 = vmatpush1.msra.mxu0 0.0
        %1528 = vmatprep.mubr.f32.mxu0 0.0
        %v1529 = vand.u32 %v268, 4294901760
        %1530 = vmatmul.mubr.f32.gmra.mrb[0].mxu0 %v1529
        %v1531 = vpop.f32.mrb[0].mxu0
        %v1532 = vadd.f32 %v1429, %v1531
        %v1533 = vpop.f32.mrb[0].mxu0
        %v1534 = vadd.f32 %v1431, %v1533
        %1535 = vmatprep.mubr.f32.mxu0 0.0
        %v1536 = vand.u32 %v271, 4294901760
        %1537 = vmatmul.mubr.f32.gmra.mrb[0].mxu0 %v1536
        %v1538 = vpop.f32.mrb[0].mxu0
        %v1539 = vadd.f32 %v1440, %v1538
        %v1540 = vpop.f32.mrb[0].mxu0
        %v1541 = vadd.f32 %v1442, %v1540
        %1542 = vdwg.mxu0
        %v1543 = vand.u32 %v255, 4294901760
        %v1544 = vsub.f32 %v255, %v1543
        %1545 = vmatprep.subr.mxu0 %v1544
        %v1546 = vand.u32 %v254, 4294901760
        %v1547 = vsub.f32 %v254, %v1546
        %1548 = vmatpush1.msra.mxu0 %v1547
        %v1549 = vand.u32 %v263, 4294901760
        %v1550 = vsub.f32 %v263, %v1549
        %1551 = vmatprep.subr.mxu0 %v1550
        %v1552 = vand.u32 %v262, 4294901760
        %v1553 = vsub.f32 %v262, %v1552
        %1554 = vmatpush1.msra.mxu0 %v1553
        %1555 = vmatprep.subr.mxu0 0.0
        %1556 = vmatpush1.msra.mxu0 0.0
        %1557 = vmatprep.subr.mxu0 0.0
        %1558 = vmatpush1.msra.mxu0 0.0
        %1559 = vmatprep.subr.mxu0 0.0
        %1560 = vmatpush1.msra.mxu0 0.0
        %1561 = vmatprep.subr.mxu0 0.0
        %1562 = vmatpush1.msra.mxu0 0.0
        %1563 = vmatprep.subr.mxu0 0.0
        %1564 = vmatpush1.msra.mxu0 0.0
        %1565 = vmatprep.subr.mxu0 0.0
        %1566 = vmatpush1.msra.mxu0 0.0
        %1567 = vmatprep.subr.mxu0 0.0
        %1568 = vmatpush1.msra.mxu0 0.0
        %1569 = vmatprep.subr.mxu0 0.0
        %1570 = vmatpush1.msra.mxu0 0.0
        %1571 = vmatprep.subr.mxu0 0.0
        %1572 = vmatpush1.msra.mxu0 0.0
        %1573 = vmatprep.subr.mxu0 0.0
        %1574 = vmatpush1.msra.mxu0 0.0
        %1575 = vmatprep.subr.mxu0 0.0
        %1576 = vmatpush1.msra.mxu0 0.0
        %1577 = vmatprep.subr.mxu0 0.0
        %1578 = vmatpush1.msra.mxu0 0.0
        %1579 = vmatprep.subr.mxu0 0.0
        %1580 = vmatpush1.msra.mxu0 0.0
        %1581 = vmatprep.subr.mxu0 0.0
        %1582 = vmatpush1.msra.mxu0 0.0
        %1583 = vmatprep.subr.mxu0 0.0
        %1584 = vmatpush1.msra.mxu0 0.0
        %1585 = vmatprep.subr.mxu0 0.0
        %1586 = vmatpush1.msra.mxu0 0.0
        %1587 = vmatprep.subr.mxu0 0.0
        %1588 = vmatpush1.msra.mxu0 0.0
        %1589 = vmatprep.subr.mxu0 0.0
        %1590 = vmatpush1.msra.mxu0 0.0
        %1591 = vmatprep.subr.mxu0 0.0
        %1592 = vmatpush1.msra.mxu0 0.0
        %1593 = vmatprep.subr.mxu0 0.0
        %1594 = vmatpush1.msra.mxu0 0.0
        %1595 = vmatprep.subr.mxu0 0.0
        %1596 = vmatpush1.msra.mxu0 0.0
        %1597 = vmatprep.subr.mxu0 0.0
        %1598 = vmatpush1.msra.mxu0 0.0
        %1599 = vmatprep.subr.mxu0 0.0
        %1600 = vmatpush1.msra.mxu0 0.0
        %1601 = vmatprep.subr.mxu0 0.0
        %1602 = vmatpush1.msra.mxu0 0.0
        %1603 = vmatprep.subr.mxu0 0.0
        %1604 = vmatpush1.msra.mxu0 0.0
        %1605 = vmatprep.subr.mxu0 0.0
        %1606 = vmatpush1.msra.mxu0 0.0
        %1607 = vmatprep.subr.mxu0 0.0
        %1608 = vmatpush1.msra.mxu0 0.0
        %1609 = vmatprep.subr.mxu0 0.0
        %1610 = vmatpush1.msra.mxu0 0.0
        %1611 = vmatprep.subr.mxu0 0.0
        %1612 = vmatpush1.msra.mxu0 0.0
        %1613 = vmatprep.subr.mxu0 0.0
        %1614 = vmatpush1.msra.mxu0 0.0
        %1615 = vmatprep.mubr.f32.mxu0 0.0
        %v1616 = vand.u32 %v268, 4294901760
        %v1617 = vsub.f32 %v268, %v1616
        %1618 = vmatmul.mubr.f32.gmra.mrb[0].mxu0 %v1617
        %v1619 = vpop.f32.mrb[0].mxu0
        %v1620 = vadd.f32 %v1532, %v1619
        %v1621 = vpop.f32.mrb[0].mxu0
        %v1622 = vadd.f32 %v1534, %v1621
        %1623 = vmatprep.mubr.f32.mxu0 0.0
        %v1624 = vand.u32 %v271, 4294901760
        %v1625 = vsub.f32 %v271, %v1624
        %1626 = vmatmul.mubr.f32.gmra.mrb[0].mxu0 %v1625
        %v1627 = vpop.f32.mrb[0].mxu0
        %v1628 = vadd.f32 %v1539, %v1627
        %v1629 = vpop.f32.mrb[0].mxu0
        %v1630 = vadd.f32 %v1541, %v1629
        %1631 = vdwg.mxu0
        %v1632 = vand.u32 %v255, 4294901760
        %1633 = vmatprep.subr.mxu0 %v1632
        %v1634 = vand.u32 %v254, 4294901760
        %1635 = vmatpush1.msra.mxu0 %v1634
        %v1636 = vand.u32 %v263, 4294901760
        %1637 = vmatprep.subr.mxu0 %v1636
        %v1638 = vand.u32 %v262, 4294901760
        %1639 = vmatpush1.msra.mxu0 %v1638
        %1640 = vmatprep.subr.mxu0 0.0
        %1641 = vmatpush1.msra.mxu0 0.0
        %1642 = vmatprep.subr.mxu0 0.0
        %1643 = vmatpush1.msra.mxu0 0.0
        %1644 = vmatprep.subr.mxu0 0.0
        %1645 = vmatpush1.msra.mxu0 0.0
        %1646 = vmatprep.subr.mxu0 0.0
        %1647 = vmatpush1.msra.mxu0 0.0
        %1648 = vmatprep.subr.mxu0 0.0
        %1649 = vmatpush1.msra.mxu0 0.0
        %1650 = vmatprep.subr.mxu0 0.0
        %1651 = vmatpush1.msra.mxu0 0.0
        %1652 = vmatprep.subr.mxu0 0.0
        %1653 = vmatpush1.msra.mxu0 0.0
        %1654 = vmatprep.subr.mxu0 0.0
        %1655 = vmatpush1.msra.mxu0 0.0
        %1656 = vmatprep.subr.mxu0 0.0
        %1657 = vmatpush1.msra.mxu0 0.0
        %1658 = vmatprep.subr.mxu0 0.0
        %1659 = vmatpush1.msra.mxu0 0.0
        %1660 = vmatprep.subr.mxu0 0.0
        %1661 = vmatpush1.msra.mxu0 0.0
        %1662 = vmatprep.subr.mxu0 0.0
        %1663 = vmatpush1.msra.mxu0 0.0
        %1664 = vmatprep.subr.mxu0 0.0
        %1665 = vmatpush1.msra.mxu0 0.0
        %1666 = vmatprep.subr.mxu0 0.0
        %1667 = vmatpush1.msra.mxu0 0.0
        %1668 = vmatprep.subr.mxu0 0.0
        %1669 = vmatpush1.msra.mxu0 0.0
        %1670 = vmatprep.subr.mxu0 0.0
        %1671 = vmatpush1.msra.mxu0 0.0
        %1672 = vmatprep.subr.mxu0 0.0
        %1673 = vmatpush1.msra.mxu0 0.0
        %1674 = vmatprep.subr.mxu0 0.0
        %1675 = vmatpush1.msra.mxu0 0.0
        %1676 = vmatprep.subr.mxu0 0.0
        %1677 = vmatpush1.msra.mxu0 0.0
        %1678 = vmatprep.subr.mxu0 0.0
        %1679 = vmatpush1.msra.mxu0 0.0
        %1680 = vmatprep.subr.mxu0 0.0
        %1681 = vmatpush1.msra.mxu0 0.0
        %1682 = vmatprep.subr.mxu0 0.0
        %1683 = vmatpush1.msra.mxu0 0.0
        %1684 = vmatprep.subr.mxu0 0.0
        %1685 = vmatpush1.msra.mxu0 0.0
        %1686 = vmatprep.subr.mxu0 0.0
        %1687 = vmatpush1.msra.mxu0 0.0
        %1688 = vmatprep.subr.mxu0 0.0
        %1689 = vmatpush1.msra.mxu0 0.0
        %1690 = vmatprep.subr.mxu0 0.0
        %1691 = vmatpush1.msra.mxu0 0.0
        %1692 = vmatprep.subr.mxu0 0.0
        %1693 = vmatpush1.msra.mxu0 0.0
        %1694 = vmatprep.subr.mxu0 0.0
        %1695 = vmatpush1.msra.mxu0 0.0
        %1696 = vmatprep.subr.mxu0 0.0
        %1697 = vmatpush1.msra.mxu0 0.0
        %1698 = vmatprep.subr.mxu0 0.0
        %1699 = vmatpush1.msra.mxu0 0.0
        %1700 = vmatprep.mubr.f32.mxu0 0.0
        %v1701 = vand.u32 %v268, 4294901760
        %v1702 = vsub.f32 %v268, %v1701
        %v1703 = vand.u32 %v1702, 4294901760
        %1704 = vmatmul.mubr.f32.gmra.mrb[0].mxu0 %v1703
        %v1705 = vpop.f32.mrb[0].mxu0
        %v1706 = vadd.f32 %v1620, %v1705
        %v1707 = vpop.f32.mrb[0].mxu0
        %v1708 = vadd.f32 %v1622, %v1707
        %1709 = vmatprep.mubr.f32.mxu0 0.0
        %v1710 = vand.u32 %v271, 4294901760
        %v1711 = vsub.f32 %v271, %v1710
        %v1712 = vand.u32 %v1711, 4294901760
        %1713 = vmatmul.mubr.f32.gmra.mrb[0].mxu0 %v1712
        %v1714 = vpop.f32.mrb[0].mxu0
        %v1715 = vadd.f32 %v1628, %v1714
        %v1716 = vpop.f32.mrb[0].mxu0
        %v1717 = vadd.f32 %v1630, %v1716
        %1718 = vdwg.mxu0
        %v1719 = vand.u32 %v255, 4294901760
        %v1720 = vsub.f32 %v255, %v1719
        %v1721 = vand.u32 %v1720, 4294901760
        %1722 = vmatprep.subr.mxu0 %v1721
        %v1723 = vand.u32 %v254, 4294901760
        %v1724 = vsub.f32 %v254, %v1723
        %v1725 = vand.u32 %v1724, 4294901760
        %1726 = vmatpush1.msra.mxu0 %v1725
        %v1727 = vand.u32 %v263, 4294901760
        %v1728 = vsub.f32 %v263, %v1727
        %v1729 = vand.u32 %v1728, 4294901760
        %1730 = vmatprep.subr.mxu0 %v1729
        %v1731 = vand.u32 %v262, 4294901760
        %v1732 = vsub.f32 %v262, %v1731
        %v1733 = vand.u32 %v1732, 4294901760
        %1734 = vmatpush1.msra.mxu0 %v1733
        %1735 = vmatprep.subr.mxu0 0.0
        %1736 = vmatpush1.msra.mxu0 0.0
        %1737 = vmatprep.subr.mxu0 0.0
        %1738 = vmatpush1.msra.mxu0 0.0
        %1739 = vmatprep.subr.mxu0 0.0
        %1740 = vmatpush1.msra.mxu0 0.0
        %1741 = vmatprep.subr.mxu0 0.0
        %1742 = vmatpush1.msra.mxu0 0.0
        %1743 = vmatprep.subr.mxu0 0.0
        %1744 = vmatpush1.msra.mxu0 0.0
        %1745 = vmatprep.subr.mxu0 0.0
        %1746 = vmatpush1.msra.mxu0 0.0
        %1747 = vmatprep.subr.mxu0 0.0
        %1748 = vmatpush1.msra.mxu0 0.0
        %1749 = vmatprep.subr.mxu0 0.0
        %1750 = vmatpush1.msra.mxu0 0.0
        %1751 = vmatprep.subr.mxu0 0.0
        %1752 = vmatpush1.msra.mxu0 0.0
        %1753 = vmatprep.subr.mxu0 0.0
        %1754 = vmatpush1.msra.mxu0 0.0
        %1755 = vmatprep.subr.mxu0 0.0
        %1756 = vmatpush1.msra.mxu0 0.0
        %1757 = vmatprep.subr.mxu0 0.0
        %1758 = vmatpush1.msra.mxu0 0.0
        %1759 = vmatprep.subr.mxu0 0.0
        %1760 = vmatpush1.msra.mxu0 0.0
        %1761 = vmatprep.subr.mxu0 0.0
        %1762 = vmatpush1.msra.mxu0 0.0
        %1763 = vmatprep.subr.mxu0 0.0
        %1764 = vmatpush1.msra.mxu0 0.0
        %1765 = vmatprep.subr.mxu0 0.0
        %1766 = vmatpush1.msra.mxu0 0.0
        %1767 = vmatprep.subr.mxu0 0.0
        %1768 = vmatpush1.msra.mxu0 0.0
        %1769 = vmatprep.subr.mxu0 0.0
        %1770 = vmatpush1.msra.mxu0 0.0
        %1771 = vmatprep.subr.mxu0 0.0
        %1772 = vmatpush1.msra.mxu0 0.0
        %1773 = vmatprep.subr.mxu0 0.0
        %1774 = vmatpush1.msra.mxu0 0.0
        %1775 = vmatprep.subr.mxu0 0.0
        %1776 = vmatpush1.msra.mxu0 0.0
        %1777 = vmatprep.subr.mxu0 0.0
        %1778 = vmatpush1.msra.mxu0 0.0
        %1779 = vmatprep.subr.mxu0 0.0
        %1780 = vmatpush1.msra.mxu0 0.0
        %1781 = vmatprep.subr.mxu0 0.0
        %1782 = vmatpush1.msra.mxu0 0.0
        %1783 = vmatprep.subr.mxu0 0.0
        %1784 = vmatpush1.msra.mxu0 0.0
        %1785 = vmatprep.subr.mxu0 0.0
        %1786 = vmatpush1.msra.mxu0 0.0
        %1787 = vmatprep.subr.mxu0 0.0
        %1788 = vmatpush1.msra.mxu0 0.0
        %1789 = vmatprep.subr.mxu0 0.0
        %1790 = vmatpush1.msra.mxu0 0.0
        %1791 = vmatprep.subr.mxu0 0.0
        %1792 = vmatpush1.msra.mxu0 0.0
        %1793 = vmatprep.subr.mxu0 0.0
        %1794 = vmatpush1.msra.mxu0 0.0
        %1795 = vmatprep.mubr.f32.mxu0 0.0
        %v1796 = vand.u32 %v268, 4294901760
        %1797 = vmatmul.mubr.f32.gmra.mrb[0].mxu0 %v1796
        %v1798 = vpop.f32.mrb[0].mxu0
        %v1799 = vadd.f32 %v1706, %v1798
        %v1800 = vpop.f32.mrb[0].mxu0
        %v1801 = vadd.f32 %v1708, %v1800
        %1802 = vmatprep.mubr.f32.mxu0 0.0
        %v1803 = vand.u32 %v271, 4294901760
        %1804 = vmatmul.mubr.f32.gmra.mrb[0].mxu0 %v1803
        %v1805 = vpop.f32.mrb[0].mxu0
        %v1806 = vadd.f32 %v1715, %v1805
        %v1807 = vpop.f32.mrb[0].mxu0
        %v1808 = vadd.f32 %v1717, %v1807
        %1809 = vdwg.mxu0
        %v1810 = vand.u32 %v255, 4294901760
        %1811 = vmatprep.subr.mxu0 %v1810
        %v1812 = vand.u32 %v254, 4294901760
        %1813 = vmatpush1.msra.mxu0 %v1812
        %v1814 = vand.u32 %v263, 4294901760
        %1815 = vmatprep.subr.mxu0 %v1814
        %v1816 = vand.u32 %v262, 4294901760
        %1817 = vmatpush1.msra.mxu0 %v1816
        %1818 = vmatprep.subr.mxu0 0.0
        %1819 = vmatpush1.msra.mxu0 0.0
        %1820 = vmatprep.subr.mxu0 0.0
        %1821 = vmatpush1.msra.mxu0 0.0
        %1822 = vmatprep.subr.mxu0 0.0
        %1823 = vmatpush1.msra.mxu0 0.0
        %1824 = vmatprep.subr.mxu0 0.0
        %1825 = vmatpush1.msra.mxu0 0.0
        %1826 = vmatprep.subr.mxu0 0.0
        %1827 = vmatpush1.msra.mxu0 0.0
        %1828 = vmatprep.subr.mxu0 0.0
        %1829 = vmatpush1.msra.mxu0 0.0
        %1830 = vmatprep.subr.mxu0 0.0
        %1831 = vmatpush1.msra.mxu0 0.0
        %1832 = vmatprep.subr.mxu0 0.0
        %1833 = vmatpush1.msra.mxu0 0.0
        %1834 = vmatprep.subr.mxu0 0.0
        %1835 = vmatpush1.msra.mxu0 0.0
        %1836 = vmatprep.subr.mxu0 0.0
        %1837 = vmatpush1.msra.mxu0 0.0
        %1838 = vmatprep.subr.mxu0 0.0
        %1839 = vmatpush1.msra.mxu0 0.0
        %1840 = vmatprep.subr.mxu0 0.0
        %1841 = vmatpush1.msra.mxu0 0.0
        %1842 = vmatprep.subr.mxu0 0.0
        %1843 = vmatpush1.msra.mxu0 0.0
        %1844 = vmatprep.subr.mxu0 0.0
        %1845 = vmatpush1.msra.mxu0 0.0
        %1846 = vmatprep.subr.mxu0 0.0
        %1847 = vmatpush1.msra.mxu0 0.0
        %1848 = vmatprep.subr.mxu0 0.0
        %1849 = vmatpush1.msra.mxu0 0.0
        %1850 = vmatprep.subr.mxu0 0.0
        %1851 = vmatpush1.msra.mxu0 0.0
        %1852 = vmatprep.subr.mxu0 0.0
        %1853 = vmatpush1.msra.mxu0 0.0
        %1854 = vmatprep.subr.mxu0 0.0
        %1855 = vmatpush1.msra.mxu0 0.0
        %1856 = vmatprep.subr.mxu0 0.0
        %1857 = vmatpush1.msra.mxu0 0.0
        %1858 = vmatprep.subr.mxu0 0.0
        %1859 = vmatpush1.msra.mxu0 0.0
        %1860 = vmatprep.subr.mxu0 0.0
        %1861 = vmatpush1.msra.mxu0 0.0
        %1862 = vmatprep.subr.mxu0 0.0
        %1863 = vmatpush1.msra.mxu0 0.0
        %1864 = vmatprep.subr.mxu0 0.0
        %1865 = vmatpush1.msra.mxu0 0.0
        %1866 = vmatprep.subr.mxu0 0.0
        %1867 = vmatpush1.msra.mxu0 0.0
        %1868 = vmatprep.subr.mxu0 0.0
        %1869 = vmatpush1.msra.mxu0 0.0
        %1870 = vmatprep.subr.mxu0 0.0
        %1871 = vmatpush1.msra.mxu0 0.0
        %1872 = vmatprep.subr.mxu0 0.0
        %1873 = vmatpush1.msra.mxu0 0.0
        %1874 = vmatprep.subr.mxu0 0.0
        %1875 = vmatpush1.msra.mxu0 0.0
        %1876 = vmatprep.subr.mxu0 0.0
        %1877 = vmatpush1.msra.mxu0 0.0
        %1878 = vmatprep.mubr.f32.mxu0 0.0
        %v1879 = vand.u32 %v268, 4294901760
        %1880 = vmatmul.mubr.f32.gmra.mrb[0].mxu0 %v1879
        %v1881 = vpop.f32.mrb[0].mxu0
        %v1882 = vadd.f32 %v1799, %v1881
        %v1883 = vpop.f32.mrb[0].mxu0
        %v1884 = vadd.f32 %v1801, %v1883
        %1885 = vmatprep.mubr.f32.mxu0 0.0
        %v1886 = vand.u32 %v271, 4294901760
        %1887 = vmatmul.mubr.f32.gmra.mrb[0].mxu0 %v1886
        %v1888 = vpop.f32.mrb[0].mxu0
        %v1889 = vadd.f32 %v1806, %v1888
        %v1890 = vpop.f32.mrb[0].mxu0
        %v1891 = vadd.f32 %v1808, %v1890
        %1892 = vdwg.mxu0
        %v1893 = vand.u32 %v257, 4294901760
        %1894 = vmatprep.subr.mxu0 %v1893
        %v1895 = vand.u32 %v256, 4294901760
        %1896 = vmatpush1.msra.mxu0 %v1895
        %v1897 = vand.u32 %v265, 4294901760
        %1898 = vmatprep.subr.mxu0 %v1897
        %v1899 = vand.u32 %v264, 4294901760
        %1900 = vmatpush1.msra.mxu0 %v1899
        %1901 = vmatprep.subr.mxu0 0.0
        %1902 = vmatpush1.msra.mxu0 0.0
        %1903 = vmatprep.subr.mxu0 0.0
        %1904 = vmatpush1.msra.mxu0 0.0
        %1905 = vmatprep.subr.mxu0 0.0
        %1906 = vmatpush1.msra.mxu0 0.0
        %1907 = vmatprep.subr.mxu0 0.0
        %1908 = vmatpush1.msra.mxu0 0.0
        %1909 = vmatprep.subr.mxu0 0.0
        %1910 = vmatpush1.msra.mxu0 0.0
        %1911 = vmatprep.subr.mxu0 0.0
        %1912 = vmatpush1.msra.mxu0 0.0
        %1913 = vmatprep.subr.mxu0 0.0
        %1914 = vmatpush1.msra.mxu0 0.0
        %1915 = vmatprep.subr.mxu0 0.0
        %1916 = vmatpush1.msra.mxu0 0.0
        %1917 = vmatprep.subr.mxu0 0.0
        %1918 = vmatpush1.msra.mxu0 0.0
        %1919 = vmatprep.subr.mxu0 0.0
        %1920 = vmatpush1.msra.mxu0 0.0
        %1921 = vmatprep.subr.mxu0 0.0
        %1922 = vmatpush1.msra.mxu0 0.0
        %1923 = vmatprep.subr.mxu0 0.0
        %1924 = vmatpush1.msra.mxu0 0.0
        %1925 = vmatprep.subr.mxu0 0.0
        %1926 = vmatpush1.msra.mxu0 0.0
        %1927 = vmatprep.subr.mxu0 0.0
        %1928 = vmatpush1.msra.mxu0 0.0
        %1929 = vmatprep.subr.mxu0 0.0
        %1930 = vmatpush1.msra.mxu0 0.0
        %1931 = vmatprep.subr.mxu0 0.0
        %1932 = vmatpush1.msra.mxu0 0.0
        %1933 = vmatprep.subr.mxu0 0.0
        %1934 = vmatpush1.msra.mxu0 0.0
        %1935 = vmatprep.subr.mxu0 0.0
        %1936 = vmatpush1.msra.mxu0 0.0
        %1937 = vmatprep.subr.mxu0 0.0
        %1938 = vmatpush1.msra.mxu0 0.0
        %1939 = vmatprep.subr.mxu0 0.0
        %1940 = vmatpush1.msra.mxu0 0.0
        %1941 = vmatprep.subr.mxu0 0.0
        %1942 = vmatpush1.msra.mxu0 0.0
        %1943 = vmatprep.subr.mxu0 0.0
        %1944 = vmatpush1.msra.mxu0 0.0
        %1945 = vmatprep.subr.mxu0 0.0
        %1946 = vmatpush1.msra.mxu0 0.0
        %1947 = vmatprep.subr.mxu0 0.0
        %1948 = vmatpush1.msra.mxu0 0.0
        %1949 = vmatprep.subr.mxu0 0.0
        %1950 = vmatpush1.msra.mxu0 0.0
        %1951 = vmatprep.subr.mxu0 0.0
        %1952 = vmatpush1.msra.mxu0 0.0
        %1953 = vmatprep.subr.mxu0 0.0
        %1954 = vmatpush1.msra.mxu0 0.0
        %1955 = vmatprep.subr.mxu0 0.0
        %1956 = vmatpush1.msra.mxu0 0.0
        %1957 = vmatprep.subr.mxu0 0.0
        %1958 = vmatpush1.msra.mxu0 0.0
        %1959 = vmatprep.subr.mxu0 0.0
        %1960 = vmatpush1.msra.mxu0 0.0
        %1961 = vmatprep.mubr.f32.mxu0 0.0
        %v1962 = vand.u32 %v268, 4294901760
        %v1963 = vsub.f32 %v268, %v1962
        %v1964 = vand.u32 %v1963, 4294901760
        %v1965 = vsub.f32 %v1963, %v1964
        %v1966 = vand.u32 %v1965, 4294901760
        %1967 = vmatmul.mubr.f32.gmra.mrb[0].mxu0 %v1966
        %v1968 = vpop.f32.mrb[0].mxu0
        %v1969 = vadd.f32 0.0, %v1968
        %v1970 = vpop.f32.mrb[0].mxu0
        %v1971 = vadd.f32 0.0, %v1970
        %1972 = vmatprep.mubr.f32.mxu0 0.0
        %v1973 = vand.u32 %v271, 4294901760
        %v1974 = vsub.f32 %v271, %v1973
        %v1975 = vand.u32 %v1974, 4294901760
        %v1976 = vsub.f32 %v1974, %v1975
        %v1977 = vand.u32 %v1976, 4294901760
        %1978 = vmatmul.mubr.f32.gmra.mrb[0].mxu0 %v1977
        %v1979 = vpop.f32.mrb[0].mxu0
        %v1980 = vadd.f32 0.0, %v1979
        %v1981 = vpop.f32.mrb[0].mxu0
        %v1982 = vadd.f32 0.0, %v1981
        %1983 = vdwg.mxu0
        %v1984 = vand.u32 %v257, 4294901760
        %v1985 = vsub.f32 %v257, %v1984
        %v1986 = vand.u32 %v1985, 4294901760
        %v1987 = vsub.f32 %v1985, %v1986
        %v1988 = vand.u32 %v1987, 4294901760
        %1989 = vmatprep.subr.mxu0 %v1988
        %v1990 = vand.u32 %v256, 4294901760
        %v1991 = vsub.f32 %v256, %v1990
        %v1992 = vand.u32 %v1991, 4294901760
        %v1993 = vsub.f32 %v1991, %v1992
        %v1994 = vand.u32 %v1993, 4294901760
        %1995 = vmatpush1.msra.mxu0 %v1994
        %v1996 = vand.u32 %v265, 4294901760
        %v1997 = vsub.f32 %v265, %v1996
        %v1998 = vand.u32 %v1997, 4294901760
        %v1999 = vsub.f32 %v1997, %v1998
        %v2000 = vand.u32 %v1999, 4294901760
        %2001 = vmatprep.subr.mxu0 %v2000
        %v2002 = vand.u32 %v264, 4294901760
        %v2003 = vsub.f32 %v264, %v2002
        %v2004 = vand.u32 %v2003, 4294901760
        %v2005 = vsub.f32 %v2003, %v2004
        %v2006 = vand.u32 %v2005, 4294901760
        %2007 = vmatpush1.msra.mxu0 %v2006
        %2008 = vmatprep.subr.mxu0 0.0
        %2009 = vmatpush1.msra.mxu0 0.0
        %2010 = vmatprep.subr.mxu0 0.0
        %2011 = vmatpush1.msra.mxu0 0.0
        %2012 = vmatprep.subr.mxu0 0.0
        %2013 = vmatpush1.msra.mxu0 0.0
        %2014 = vmatprep.subr.mxu0 0.0
        %2015 = vmatpush1.msra.mxu0 0.0
        %2016 = vmatprep.subr.mxu0 0.0
        %2017 = vmatpush1.msra.mxu0 0.0
        %2018 = vmatprep.subr.mxu0 0.0
        %2019 = vmatpush1.msra.mxu0 0.0
        %2020 = vmatprep.subr.mxu0 0.0
        %2021 = vmatpush1.msra.mxu0 0.0
        %2022 = vmatprep.subr.mxu0 0.0
        %2023 = vmatpush1.msra.mxu0 0.0
        %2024 = vmatprep.subr.mxu0 0.0
        %2025 = vmatpush1.msra.mxu0 0.0
        %2026 = vmatprep.subr.mxu0 0.0
        %2027 = vmatpush1.msra.mxu0 0.0
        %2028 = vmatprep.subr.mxu0 0.0
        %2029 = vmatpush1.msra.mxu0 0.0
        %2030 = vmatprep.subr.mxu0 0.0
        %2031 = vmatpush1.msra.mxu0 0.0
        %2032 = vmatprep.subr.mxu0 0.0
        %2033 = vmatpush1.msra.mxu0 0.0
        %2034 = vmatprep.subr.mxu0 0.0
        %2035 = vmatpush1.msra.mxu0 0.0
        %2036 = vmatprep.subr.mxu0 0.0
        %2037 = vmatpush1.msra.mxu0 0.0
        %2038 = vmatprep.subr.mxu0 0.0
        %2039 = vmatpush1.msra.mxu0 0.0
        %2040 = vmatprep.subr.mxu0 0.0
        %2041 = vmatpush1.msra.mxu0 0.0
        %2042 = vmatprep.subr.mxu0 0.0
        %2043 = vmatpush1.msra.mxu0 0.0
        %2044 = vmatprep.subr.mxu0 0.0
        %2045 = vmatpush1.msra.mxu0 0.0
        %2046 = vmatprep.subr.mxu0 0.0
        %2047 = vmatpush1.msra.mxu0 0.0
        %2048 = vmatprep.subr.mxu0 0.0
        %2049 = vmatpush1.msra.mxu0 0.0
        %2050 = vmatprep.subr.mxu0 0.0
        %2051 = vmatpush1.msra.mxu0 0.0
        %2052 = vmatprep.subr.mxu0 0.0
        %2053 = vmatpush1.msra.mxu0 0.0
        %2054 = vmatprep.subr.mxu0 0.0
        %2055 = vmatpush1.msra.mxu0 0.0
        %2056 = vmatprep.subr.mxu0 0.0
        %2057 = vmatpush1.msra.mxu0 0.0
        %2058 = vmatprep.subr.mxu0 0.0
        %2059 = vmatpush1.msra.mxu0 0.0
        %2060 = vmatprep.subr.mxu0 0.0
        %2061 = vmatpush1.msra.mxu0 0.0
        %2062 = vmatprep.subr.mxu0 0.0
        %2063 = vmatpush1.msra.mxu0 0.0
        %2064 = vmatprep.subr.mxu0 0.0
        %2065 = vmatpush1.msra.mxu0 0.0
        %2066 = vmatprep.subr.mxu0 0.0
        %2067 = vmatpush1.msra.mxu0 0.0
        %2068 = vmatprep.mubr.f32.mxu0 0.0
        %v2069 = vand.u32 %v268, 4294901760
        %2070 = vmatmul.mubr.f32.gmra.mrb[0].mxu0 %v2069
        %v2071 = vpop.f32.mrb[0].mxu0
        %v2072 = vadd.f32 %v1969, %v2071
        %v2073 = vpop.f32.mrb[0].mxu0
        %v2074 = vadd.f32 %v1971, %v2073
        %2075 = vmatprep.mubr.f32.mxu0 0.0
        %v2076 = vand.u32 %v271, 4294901760
        %2077 = vmatmul.mubr.f32.gmra.mrb[0].mxu0 %v2076
        %v2078 = vpop.f32.mrb[0].mxu0
        %v2079 = vadd.f32 %v1980, %v2078
        %v2080 = vpop.f32.mrb[0].mxu0
        %v2081 = vadd.f32 %v1982, %v2080
        %2082 = vdwg.mxu0
        %v2083 = vand.u32 %v257, 4294901760
        %v2084 = vsub.f32 %v257, %v2083
        %2085 = vmatprep.subr.mxu0 %v2084
        %v2086 = vand.u32 %v256, 4294901760
        %v2087 = vsub.f32 %v256, %v2086
        %2088 = vmatpush1.msra.mxu0 %v2087
        %v2089 = vand.u32 %v265, 4294901760
        %v2090 = vsub.f32 %v265, %v2089
        %2091 = vmatprep.subr.mxu0 %v2090
        %v2092 = vand.u32 %v264, 4294901760
        %v2093 = vsub.f32 %v264, %v2092
        %2094 = vmatpush1.msra.mxu0 %v2093
        %2095 = vmatprep.subr.mxu0 0.0
        %2096 = vmatpush1.msra.mxu0 0.0
        %2097 = vmatprep.subr.mxu0 0.0
        %2098 = vmatpush1.msra.mxu0 0.0
        %2099 = vmatprep.subr.mxu0 0.0
        %2100 = vmatpush1.msra.mxu0 0.0
        %2101 = vmatprep.subr.mxu0 0.0
        %2102 = vmatpush1.msra.mxu0 0.0
        %2103 = vmatprep.subr.mxu0 0.0
        %2104 = vmatpush1.msra.mxu0 0.0
        %2105 = vmatprep.subr.mxu0 0.0
        %2106 = vmatpush1.msra.mxu0 0.0
        %2107 = vmatprep.subr.mxu0 0.0
        %2108 = vmatpush1.msra.mxu0 0.0
        %2109 = vmatprep.subr.mxu0 0.0
        %2110 = vmatpush1.msra.mxu0 0.0
        %2111 = vmatprep.subr.mxu0 0.0
        %2112 = vmatpush1.msra.mxu0 0.0
        %2113 = vmatprep.subr.mxu0 0.0
        %2114 = vmatpush1.msra.mxu0 0.0
        %2115 = vmatprep.subr.mxu0 0.0
        %2116 = vmatpush1.msra.mxu0 0.0
        %2117 = vmatprep.subr.mxu0 0.0
        %2118 = vmatpush1.msra.mxu0 0.0
        %2119 = vmatprep.subr.mxu0 0.0
        %2120 = vmatpush1.msra.mxu0 0.0
        %2121 = vmatprep.subr.mxu0 0.0
        %2122 = vmatpush1.msra.mxu0 0.0
        %2123 = vmatprep.subr.mxu0 0.0
        %2124 = vmatpush1.msra.mxu0 0.0
        %2125 = vmatprep.subr.mxu0 0.0
        %2126 = vmatpush1.msra.mxu0 0.0
        %2127 = vmatprep.subr.mxu0 0.0
        %2128 = vmatpush1.msra.mxu0 0.0
        %2129 = vmatprep.subr.mxu0 0.0
        %2130 = vmatpush1.msra.mxu0 0.0
        %2131 = vmatprep.subr.mxu0 0.0
        %2132 = vmatpush1.msra.mxu0 0.0
        %2133 = vmatprep.subr.mxu0 0.0
        %2134 = vmatpush1.msra.mxu0 0.0
        %2135 = vmatprep.subr.mxu0 0.0
        %2136 = vmatpush1.msra.mxu0 0.0
        %2137 = vmatprep.subr.mxu0 0.0
        %2138 = vmatpush1.msra.mxu0 0.0
        %2139 = vmatprep.subr.mxu0 0.0
        %2140 = vmatpush1.msra.mxu0 0.0
        %2141 = vmatprep.subr.mxu0 0.0
        %2142 = vmatpush1.msra.mxu0 0.0
        %2143 = vmatprep.subr.mxu0 0.0
        %2144 = vmatpush1.msra.mxu0 0.0
        %2145 = vmatprep.subr.mxu0 0.0
        %2146 = vmatpush1.msra.mxu0 0.0
        %2147 = vmatprep.subr.mxu0 0.0
        %2148 = vmatpush1.msra.mxu0 0.0
        %2149 = vmatprep.subr.mxu0 0.0
        %2150 = vmatpush1.msra.mxu0 0.0
        %2151 = vmatprep.subr.mxu0 0.0
        %2152 = vmatpush1.msra.mxu0 0.0
        %2153 = vmatprep.subr.mxu0 0.0
        %2154 = vmatpush1.msra.mxu0 0.0
        %2155 = vmatprep.mubr.f32.mxu0 0.0
        %v2156 = vand.u32 %v268, 4294901760
        %v2157 = vsub.f32 %v268, %v2156
        %2158 = vmatmul.mubr.f32.gmra.mrb[0].mxu0 %v2157
        %v2159 = vpop.f32.mrb[0].mxu0
        %v2160 = vadd.f32 %v2072, %v2159
        %v2161 = vpop.f32.mrb[0].mxu0
        %v2162 = vadd.f32 %v2074, %v2161
        %2163 = vmatprep.mubr.f32.mxu0 0.0
        %v2164 = vand.u32 %v271, 4294901760
        %v2165 = vsub.f32 %v271, %v2164
        %2166 = vmatmul.mubr.f32.gmra.mrb[0].mxu0 %v2165
        %v2167 = vpop.f32.mrb[0].mxu0
        %v2168 = vadd.f32 %v2079, %v2167
        %v2169 = vpop.f32.mrb[0].mxu0
        %v2170 = vadd.f32 %v2081, %v2169
        %2171 = vdwg.mxu0
        %v2172 = vand.u32 %v257, 4294901760
        %2173 = vmatprep.subr.mxu0 %v2172
        %v2174 = vand.u32 %v256, 4294901760
        %2175 = vmatpush1.msra.mxu0 %v2174
        %v2176 = vand.u32 %v265, 4294901760
        %2177 = vmatprep.subr.mxu0 %v2176
        %v2178 = vand.u32 %v264, 4294901760
        %2179 = vmatpush1.msra.mxu0 %v2178
        %2180 = vmatprep.subr.mxu0 0.0
        %2181 = vmatpush1.msra.mxu0 0.0
        %2182 = vmatprep.subr.mxu0 0.0
        %2183 = vmatpush1.msra.mxu0 0.0
        %2184 = vmatprep.subr.mxu0 0.0
        %2185 = vmatpush1.msra.mxu0 0.0
        %2186 = vmatprep.subr.mxu0 0.0
        %2187 = vmatpush1.msra.mxu0 0.0
        %2188 = vmatprep.subr.mxu0 0.0
        %2189 = vmatpush1.msra.mxu0 0.0
        %2190 = vmatprep.subr.mxu0 0.0
        %2191 = vmatpush1.msra.mxu0 0.0
        %2192 = vmatprep.subr.mxu0 0.0
        %2193 = vmatpush1.msra.mxu0 0.0
        %2194 = vmatprep.subr.mxu0 0.0
        %2195 = vmatpush1.msra.mxu0 0.0
        %2196 = vmatprep.subr.mxu0 0.0
        %2197 = vmatpush1.msra.mxu0 0.0
        %2198 = vmatprep.subr.mxu0 0.0
        %2199 = vmatpush1.msra.mxu0 0.0
        %2200 = vmatprep.subr.mxu0 0.0
        %2201 = vmatpush1.msra.mxu0 0.0
        %2202 = vmatprep.subr.mxu0 0.0
        %2203 = vmatpush1.msra.mxu0 0.0
        %2204 = vmatprep.subr.mxu0 0.0
        %2205 = vmatpush1.msra.mxu0 0.0
        %2206 = vmatprep.subr.mxu0 0.0
        %2207 = vmatpush1.msra.mxu0 0.0
        %2208 = vmatprep.subr.mxu0 0.0
        %2209 = vmatpush1.msra.mxu0 0.0
        %2210 = vmatprep.subr.mxu0 0.0
        %2211 = vmatpush1.msra.mxu0 0.0
        %2212 = vmatprep.subr.mxu0 0.0
        %2213 = vmatpush1.msra.mxu0 0.0
        %2214 = vmatprep.subr.mxu0 0.0
        %2215 = vmatpush1.msra.mxu0 0.0
        %2216 = vmatprep.subr.mxu0 0.0
        %2217 = vmatpush1.msra.mxu0 0.0
        %2218 = vmatprep.subr.mxu0 0.0
        %2219 = vmatpush1.msra.mxu0 0.0
        %2220 = vmatprep.subr.mxu0 0.0
        %2221 = vmatpush1.msra.mxu0 0.0
        %2222 = vmatprep.subr.mxu0 0.0
        %2223 = vmatpush1.msra.mxu0 0.0
        %2224 = vmatprep.subr.mxu0 0.0
        %2225 = vmatpush1.msra.mxu0 0.0
        %2226 = vmatprep.subr.mxu0 0.0
        %2227 = vmatpush1.msra.mxu0 0.0
        %2228 = vmatprep.subr.mxu0 0.0
        %2229 = vmatpush1.msra.mxu0 0.0
        %2230 = vmatprep.subr.mxu0 0.0
        %2231 = vmatpush1.msra.mxu0 0.0
        %2232 = vmatprep.subr.mxu0 0.0
        %2233 = vmatpush1.msra.mxu0 0.0
        %2234 = vmatprep.subr.mxu0 0.0
        %2235 = vmatpush1.msra.mxu0 0.0
        %2236 = vmatprep.subr.mxu0 0.0
        %2237 = vmatpush1.msra.mxu0 0.0
        %2238 = vmatprep.subr.mxu0 0.0
        %2239 = vmatpush1.msra.mxu0 0.0
        %2240 = vmatprep.mubr.f32.mxu0 0.0
        %v2241 = vand.u32 %v268, 4294901760
        %v2242 = vsub.f32 %v268, %v2241
        %v2243 = vand.u32 %v2242, 4294901760
        %2244 = vmatmul.mubr.f32.gmra.mrb[0].mxu0 %v2243
        %v2245 = vpop.f32.mrb[0].mxu0
        %v2246 = vadd.f32 %v2160, %v2245
        %v2247 = vpop.f32.mrb[0].mxu0
        %v2248 = vadd.f32 %v2162, %v2247
        %2249 = vmatprep.mubr.f32.mxu0 0.0
        %v2250 = vand.u32 %v271, 4294901760
        %v2251 = vsub.f32 %v271, %v2250
        %v2252 = vand.u32 %v2251, 4294901760
        %2253 = vmatmul.mubr.f32.gmra.mrb[0].mxu0 %v2252
        %v2254 = vpop.f32.mrb[0].mxu0
        %v2255 = vadd.f32 %v2168, %v2254
        %v2256 = vpop.f32.mrb[0].mxu0
        %v2257 = vadd.f32 %v2170, %v2256
        %2258 = vdwg.mxu0
        %v2259 = vand.u32 %v257, 4294901760
        %v2260 = vsub.f32 %v257, %v2259
        %v2261 = vand.u32 %v2260, 4294901760
        %2262 = vmatprep.subr.mxu0 %v2261
        %v2263 = vand.u32 %v256, 4294901760
        %v2264 = vsub.f32 %v256, %v2263
        %v2265 = vand.u32 %v2264, 4294901760
        %2266 = vmatpush1.msra.mxu0 %v2265
        %v2267 = vand.u32 %v265, 4294901760
        %v2268 = vsub.f32 %v265, %v2267
        %v2269 = vand.u32 %v2268, 4294901760
        %2270 = vmatprep.subr.mxu0 %v2269
        %v2271 = vand.u32 %v264, 4294901760
        %v2272 = vsub.f32 %v264, %v2271
        %v2273 = vand.u32 %v2272, 4294901760
        %2274 = vmatpush1.msra.mxu0 %v2273
        %2275 = vmatprep.subr.mxu0 0.0
        %2276 = vmatpush1.msra.mxu0 0.0
        %2277 = vmatprep.subr.mxu0 0.0
        %2278 = vmatpush1.msra.mxu0 0.0
        %2279 = vmatprep.subr.mxu0 0.0
        %2280 = vmatpush1.msra.mxu0 0.0
        %2281 = vmatprep.subr.mxu0 0.0
        %2282 = vmatpush1.msra.mxu0 0.0
        %2283 = vmatprep.subr.mxu0 0.0
        %2284 = vmatpush1.msra.mxu0 0.0
        %2285 = vmatprep.subr.mxu0 0.0
        %2286 = vmatpush1.msra.mxu0 0.0
        %2287 = vmatprep.subr.mxu0 0.0
        %2288 = vmatpush1.msra.mxu0 0.0
        %2289 = vmatprep.subr.mxu0 0.0
        %2290 = vmatpush1.msra.mxu0 0.0
        %2291 = vmatprep.subr.mxu0 0.0
        %2292 = vmatpush1.msra.mxu0 0.0
        %2293 = vmatprep.subr.mxu0 0.0
        %2294 = vmatpush1.msra.mxu0 0.0
        %2295 = vmatprep.subr.mxu0 0.0
        %2296 = vmatpush1.msra.mxu0 0.0
        %2297 = vmatprep.subr.mxu0 0.0
        %2298 = vmatpush1.msra.mxu0 0.0
        %2299 = vmatprep.subr.mxu0 0.0
        %2300 = vmatpush1.msra.mxu0 0.0
        %2301 = vmatprep.subr.mxu0 0.0
        %2302 = vmatpush1.msra.mxu0 0.0
        %2303 = vmatprep.subr.mxu0 0.0
        %2304 = vmatpush1.msra.mxu0 0.0
        %2305 = vmatprep.subr.mxu0 0.0
        %2306 = vmatpush1.msra.mxu0 0.0
        %2307 = vmatprep.subr.mxu0 0.0
        %2308 = vmatpush1.msra.mxu0 0.0
        %2309 = vmatprep.subr.mxu0 0.0
        %2310 = vmatpush1.msra.mxu0 0.0
        %2311 = vmatprep.subr.mxu0 0.0
        %2312 = vmatpush1.msra.mxu0 0.0
        %2313 = vmatprep.subr.mxu0 0.0
        %2314 = vmatpush1.msra.mxu0 0.0
        %2315 = vmatprep.subr.mxu0 0.0
        %2316 = vmatpush1.msra.mxu0 0.0
        %2317 = vmatprep.subr.mxu0 0.0
        %2318 = vmatpush1.msra.mxu0 0.0
        %2319 = vmatprep.subr.mxu0 0.0
        %2320 = vmatpush1.msra.mxu0 0.0
        %2321 = vmatprep.subr.mxu0 0.0
        %2322 = vmatpush1.msra.mxu0 0.0
        %2323 = vmatprep.subr.mxu0 0.0
        %2324 = vmatpush1.msra.mxu0 0.0
        %2325 = vmatprep.subr.mxu0 0.0
        %2326 = vmatpush1.msra.mxu0 0.0
        %2327 = vmatprep.subr.mxu0 0.0
        %2328 = vmatpush1.msra.mxu0 0.0
        %2329 = vmatprep.subr.mxu0 0.0
        %2330 = vmatpush1.msra.mxu0 0.0
        %2331 = vmatprep.subr.mxu0 0.0
        %2332 = vmatpush1.msra.mxu0 0.0
        %2333 = vmatprep.subr.mxu0 0.0
        %2334 = vmatpush1.msra.mxu0 0.0
        %2335 = vmatprep.mubr.f32.mxu0 0.0
        %v2336 = vand.u32 %v268, 4294901760
        %2337 = vmatmul.mubr.f32.gmra.mrb[0].mxu0 %v2336
        %v2338 = vpop.f32.mrb[0].mxu0
        %v2339 = vadd.f32 %v2246, %v2338
        %v2340 = vpop.f32.mrb[0].mxu0
        %v2341 = vadd.f32 %v2248, %v2340
        %2342 = vmatprep.mubr.f32.mxu0 0.0
        %v2343 = vand.u32 %v271, 4294901760
        %2344 = vmatmul.mubr.f32.gmra.mrb[0].mxu0 %v2343
        %v2345 = vpop.f32.mrb[0].mxu0
        %v2346 = vadd.f32 %v2255, %v2345
        %v2347 = vpop.f32.mrb[0].mxu0
        %v2348 = vadd.f32 %v2257, %v2347
        %2349 = vdwg.mxu0
        %v2350 = vand.u32 %v257, 4294901760
        %2351 = vmatprep.subr.mxu0 %v2350
        %v2352 = vand.u32 %v256, 4294901760
        %2353 = vmatpush1.msra.mxu0 %v2352
        %v2354 = vand.u32 %v265, 4294901760
        %2355 = vmatprep.subr.mxu0 %v2354
        %v2356 = vand.u32 %v264, 4294901760
        %2357 = vmatpush1.msra.mxu0 %v2356
        %2358 = vmatprep.subr.mxu0 0.0
        %2359 = vmatpush1.msra.mxu0 0.0
        %2360 = vmatprep.subr.mxu0 0.0
        %2361 = vmatpush1.msra.mxu0 0.0
        %2362 = vmatprep.subr.mxu0 0.0
        %2363 = vmatpush1.msra.mxu0 0.0
        %2364 = vmatprep.subr.mxu0 0.0
        %2365 = vmatpush1.msra.mxu0 0.0
        %2366 = vmatprep.subr.mxu0 0.0
        %2367 = vmatpush1.msra.mxu0 0.0
        %2368 = vmatprep.subr.mxu0 0.0
        %2369 = vmatpush1.msra.mxu0 0.0
        %2370 = vmatprep.subr.mxu0 0.0
        %2371 = vmatpush1.msra.mxu0 0.0
        %2372 = vmatprep.subr.mxu0 0.0
        %2373 = vmatpush1.msra.mxu0 0.0
        %2374 = vmatprep.subr.mxu0 0.0
        %2375 = vmatpush1.msra.mxu0 0.0
        %2376 = vmatprep.subr.mxu0 0.0
        %2377 = vmatpush1.msra.mxu0 0.0
        %2378 = vmatprep.subr.mxu0 0.0
        %2379 = vmatpush1.msra.mxu0 0.0
        %2380 = vmatprep.subr.mxu0 0.0
        %2381 = vmatpush1.msra.mxu0 0.0
        %2382 = vmatprep.subr.mxu0 0.0
        %2383 = vmatpush1.msra.mxu0 0.0
        %2384 = vmatprep.subr.mxu0 0.0
        %2385 = vmatpush1.msra.mxu0 0.0
        %2386 = vmatprep.subr.mxu0 0.0
        %2387 = vmatpush1.msra.mxu0 0.0
        %2388 = vmatprep.subr.mxu0 0.0
        %2389 = vmatpush1.msra.mxu0 0.0
        %2390 = vmatprep.subr.mxu0 0.0
        %2391 = vmatpush1.msra.mxu0 0.0
        %2392 = vmatprep.subr.mxu0 0.0
        %2393 = vmatpush1.msra.mxu0 0.0
        %2394 = vmatprep.subr.mxu0 0.0
        %2395 = vmatpush1.msra.mxu0 0.0
        %2396 = vmatprep.subr.mxu0 0.0
        %2397 = vmatpush1.msra.mxu0 0.0
        %2398 = vmatprep.subr.mxu0 0.0
        %2399 = vmatpush1.msra.mxu0 0.0
        %2400 = vmatprep.subr.mxu0 0.0
        %2401 = vmatpush1.msra.mxu0 0.0
        %2402 = vmatprep.subr.mxu0 0.0
        %2403 = vmatpush1.msra.mxu0 0.0
        %2404 = vmatprep.subr.mxu0 0.0
        %2405 = vmatpush1.msra.mxu0 0.0
        %2406 = vmatprep.subr.mxu0 0.0
        %2407 = vmatpush1.msra.mxu0 0.0
        %2408 = vmatprep.subr.mxu0 0.0
        %2409 = vmatpush1.msra.mxu0 0.0
        %2410 = vmatprep.subr.mxu0 0.0
        %2411 = vmatpush1.msra.mxu0 0.0
        %2412 = vmatprep.subr.mxu0 0.0
        %2413 = vmatpush1.msra.mxu0 0.0
        %2414 = vmatprep.subr.mxu0 0.0
        %2415 = vmatpush1.msra.mxu0 0.0
        %2416 = vmatprep.subr.mxu0 0.0
        %2417 = vmatpush1.msra.mxu0 0.0
        %2418 = vmatprep.mubr.f32.mxu0 0.0
        %v2419 = vand.u32 %v268, 4294901760
        %2420 = vmatmul.mubr.f32.gmra.mrb[0].mxu0 %v2419
        %v2421 = vpop.f32.mrb[0].mxu0
        %v2422 = vadd.f32 %v2339, %v2421
        %v2423 = vpop.f32.mrb[0].mxu0
        %v2424 = vadd.f32 %v2341, %v2423
        %2425 = vmatprep.mubr.f32.mxu0 0.0
        %v2426 = vand.u32 %v271, 4294901760
        %2427 = vmatmul.mubr.f32.gmra.mrb[0].mxu0 %v2426
        %v2428 = vpop.f32.mrb[0].mxu0
        %v2429 = vadd.f32 %v2346, %v2428
        %v2430 = vpop.f32.mrb[0].mxu0
        %v2431 = vadd.f32 %v2348, %v2430
        %2432 = vdwg.mxu0
        %v2433 = vld [vmem:[%s2] sm:$0x1]
        %v2435 = vlaneseq
        %v2436 = vshrl.u32 %v2435, 7
        %v2437 = vsub.s32 0, %v2436
        %v2438 = vrot.slane %v2433, %v2437
        %v2440 = vmul.f32 %v248, %v2438
        %v2441 = vmul.f32 %v249, %v2438
        %v2442 = vsel %vm266, %v2440, 0.0
        %2443 = vadd.xlane.f32.xlu0 %v2442
        %v2444 = vpop.xlane.xlu0 %2443
        %v2445 = vsel %vm266, %v2441, 0.0
        %2446 = vadd.xlane.f32.xlu0 %v2445
        %v2447 = vpop.xlane.xlu0 %2446
        %2448 = vst [vmem:[%s215] sm:$0xff] %v802
        %2449 = vst [vmem:[%s215 + $0x8] sm:$0xff] %v804
        %2450 = vst [vmem:[%s215 + $0x10] sm:$0xff] %v1342
        %2451 = vst [vmem:[%s215 + $0x18] sm:$0xff] %v1344
        %2452 = vst [vmem:[%s215 + $0x28] sm:$0xff] %v809
        %2453 = vst [vmem:[%s215 + $0x30] sm:$0xff] %v811
        %2454 = vst [vmem:[%s215 + $0x38] sm:$0xff] %v1349
        %2455 = vst [vmem:[%s215 + $0x40] sm:$0xff] %v1351
        %vm2456 = vcmask 7168
        %2457 = vst.msk [vmem:[%s215 + $0x20] sm:$0xff] %vm2456, %v2444
        %2458 = vst.msk [vmem:[%s215 + $0x48] sm:$0xff] %vm2456, %v2447
        %2459 = vst [vmem:[%s221] sm:$0xff] %v1882
        %2460 = vst [vmem:[%s221 + $0x8] sm:$0xff] %v1884
        %2461 = vst [vmem:[%s221 + $0x10] sm:$0xff] %v2422
        %2462 = vst [vmem:[%s221 + $0x18] sm:$0xff] %v2424
        %2463 = vst [vmem:[%s221 + $0x28] sm:$0xff] %v1889
        %2464 = vst [vmem:[%s221 + $0x30] sm:$0xff] %v1891
        %2465 = vst [vmem:[%s221 + $0x38] sm:$0xff] %v2429
        %2466 = vst [vmem:[%s221 + $0x40] sm:$0xff] %v2431
        %2467 = vst.msk [vmem:[%s221 + $0x20] sm:$0xff] %vm2456, 0.0
        %2468 = vst.msk [vmem:[%s221 + $0x48] sm:$0xff] %vm2456, 0.0
        %s2469 = sand.u32 %s93, 1
        %s2470 = sand.u32 %s93, 1
        %s2471 = smul.addr %s2470, 80
        %s2472 = scalar_lea.vmem [#allocation4], %s2471
        %s2473 = sand.u32 %s119, 1
        %s2474 = sand.u32 %s119, 1
        %s2475 = smul.addr %s2474, 80
        %s2476 = scalar_lea.vmem [#allocation5], %s2475
        // Predicated region
        $region37: #{_dft_impl.1} parent=31 // pred_check
          %p2477 = pneg %p103
        $region38: #{_dft_impl.1} parent=31 // pred_check_branch
          %2479 = sbr.rel (%p2477) target = $region40
        $region39: #{_dft_impl.1} parent=31 // pred_region
          %s2480 = smul.u32 2, %s17
          %s2481 = ssub.s32 3, %s2480
          %p2482 = scmp.lt.s32.totalorder %s2481, 2
          %s2483 = scalar_select %p2482, %s2481, 2
          %s2484 = smul.u32 128, %s2483
          %s2485 = smul.u32 %s2484, 5
          %p2486 = scmp.ne.s32.totalorder 0, %s2485
          %s2487 = smul.addr %s2480, 5
          %s2488 = smul.addr %s2487, 8
          %s2489 = scalar_lea.vmem %s3, %s2488
          // Predicated region
          $region41: #{_dft_impl.1} parent=39 // pred_check
            %p2490 = pneg %p2486
          $region42: #{_dft_impl.1} parent=39 // pred_check_branch
            %2492 = sbr.rel (%p2490) target = $region44
          $region43: #{_dft_impl.1} parent=39 // pred_region
            // Predicated region
            $region45: #{_dft_impl.1} parent=43 // pred_check
              _
            $region46: #{_dft_impl.1} parent=43 // pred_check_branch
              %2494 = sbr.rel (0) target = $region48
            $region47: #{_dft_impl.1} parent=43 // pred_region
              %s2495 = sshrl.u32 %s2483, 1
              // While loop
              $region49: #{_dft_impl.1} parent=47 // loop_pre_header
                _
              $region50: #{_dft_impl.1} parent=47 // loop_header
                %s2497 = sphi 0, %s2499
                %p2498 = scmp.ge.s32.totalorder %s2497, %s2495
                %s2502 = sphi 0, %s2527
                %s2503 = sphi %s2472, %s2530
                %s2504 = sphi %s2489, %s2531
              $region51: #{_dft_impl.1} parent=47 // loop_header_branch
                %2501 = sbr.rel (%p2498) target = $region55
              $region52: #{_dft_impl.1} parent=47 // loop_body
                %v2505 = vld [vmem:[%s2503] sm:$0xff]
                %2506 = vst [vmem:[%s2504] sm:$0xff] %v2505
                %v2507 = vld [vmem:[%s2503 + $0x28] sm:$0xff]
                %2508 = vst [vmem:[%s2504 + $0x28] sm:$0xff] %v2507
                %v2509 = vld [vmem:[%s2503 + $0x8] sm:$0xff]
                %2510 = vst [vmem:[%s2504 + $0x8] sm:$0xff] %v2509
                %v2511 = vld [vmem:[%s2503 + $0x30] sm:$0xff]
                %2512 = vst [vmem:[%s2504 + $0x30] sm:$0xff] %v2511
                %v2513 = vld [vmem:[%s2503 + $0x10] sm:$0xff]
                %2514 = vst [vmem:[%s2504 + $0x10] sm:$0xff] %v2513
                %v2515 = vld [vmem:[%s2503 + $0x38] sm:$0xff]
                %2516 = vst [vmem:[%s2504 + $0x38] sm:$0xff] %v2515
                %v2517 = vld [vmem:[%s2503 + $0x18] sm:$0xff]
                %2518 = vst [vmem:[%s2504 + $0x18] sm:$0xff] %v2517
                %v2519 = vld [vmem:[%s2503 + $0x40] sm:$0xff]
                %2520 = vst [vmem:[%s2504 + $0x40] sm:$0xff] %v2519
                %v2521 = vld [vmem:[%s2503 + $0x20] sm:$0xff]
                %2522 = vst [vmem:[%s2504 + $0x20] sm:$0xff] %v2521
                %v2523 = vld [vmem:[%s2503 + $0x48] sm:$0xff]
                %2524 = vst [vmem:[%s2504 + $0x48] sm:$0xff] %v2523
                %s2525 = sadd.s32 1, %s2502
                %p2526 = scmp.ge.s32.totalorder %s2525, %s2495
                %s2527 = scalar_select %p2526, 0, %s2525
                %s2528 = smul.u32 %s2527, 80
                %s2529 = smul.u32 %s2527, 80
                %s2530 = scalar_lea.vmem %s2472, %s2528 [#allocation4]
                %s2531 = scalar_lea.vmem %s2489, %s2529
              $region53: #{_dft_impl.1} parent=47 // loop_footer
                %s2499 = sadd.s32 %s2497, 1
              $region54: #{_dft_impl.1} parent=47 // loop_footer_branch
                %2496 = sbr.rel target = $region50
              $region55: #{_dft_impl.1} parent=47 // loop_exit
                _
              %s2532 = sshrl.u32 %s2483, 1
              %s2533 = sand.u32 %s2483, 1
              %s2534 = smul.u32 %s2532, 2
              %s2535 = smul.u32 40, %s2534
              %s2536 = scalar_lea.vmem %s2472, %s2535 [#allocation4]
              %s2537 = smul.u32 40, %s2534
              %s2538 = scalar_lea.vmem %s2489, %s2537
              // While loop
              $region56: #{_dft_impl.1} parent=47 // loop_pre_header
                _
              $region57: #{_dft_impl.1} parent=47 // loop_header
                %s2540 = sphi 0, %s2542
                %p2541 = scmp.ge.s32.totalorder %s2540, %s2533
                %s2545 = sphi 0, %s2560
                %s2546 = sphi %s2536, %s2563
                %s2547 = sphi %s2538, %s2564
              $region58: #{_dft_impl.1} parent=47 // loop_header_branch
                %2544 = sbr.rel (%p2541) target = $region62
              $region59: #{_dft_impl.1} parent=47 // loop_body
                %v2548 = vld [vmem:[%s2546] sm:$0xff]
                %2549 = vst [vmem:[%s2547] sm:$0xff] %v2548
                %v2550 = vld [vmem:[%s2546 + $0x8] sm:$0xff]
                %2551 = vst [vmem:[%s2547 + $0x8] sm:$0xff] %v2550
                %v2552 = vld [vmem:[%s2546 + $0x10] sm:$0xff]
                %2553 = vst [vmem:[%s2547 + $0x10] sm:$0xff] %v2552
                %v2554 = vld [vmem:[%s2546 + $0x18] sm:$0xff]
                %2555 = vst [vmem:[%s2547 + $0x18] sm:$0xff] %v2554
                %v2556 = vld [vmem:[%s2546 + $0x20] sm:$0xff]
                %2557 = vst [vmem:[%s2547 + $0x20] sm:$0xff] %v2556
                %s2558 = sadd.s32 1, %s2545
                %p2559 = scmp.ge.s32.totalorder %s2558, %s2533
                %s2560 = scalar_select %p2559, 0, %s2558
                %s2561 = smul.u32 %s2560, 40
                %s2562 = smul.u32 %s2560, 40
                %s2563 = scalar_lea.vmem %s2536, %s2561 [#allocation4]
                %s2564 = scalar_lea.vmem %s2538, %s2562
              $region60: #{_dft_impl.1} parent=47 // loop_footer
                %s2542 = sadd.s32 %s2540, 1
              $region61: #{_dft_impl.1} parent=47 // loop_footer_branch
                %2539 = sbr.rel target = $region57
              $region62: #{_dft_impl.1} parent=47 // loop_exit
                _
            $region48: #{_dft_impl.1} parent=43 // pred_fallthru
              _
            // Predicated region
            $region63: #{_dft_impl.1} parent=43 // pred_check
              _
            $region64: #{_dft_impl.1} parent=43 // pred_check_branch
              %2566 = sbr.rel target = $region66
            $region65: #{_dft_impl.1} parent=43 // pred_region
              _
            $region66: #{_dft_impl.1} parent=43 // pred_fallthru
              _
          $region44: #{_dft_impl.1} parent=39 // pred_fallthru
            _
          %2567 = vnop
        $region40: #{_dft_impl.1} parent=31 // pred_fallthru
          _
        // Predicated region
        $region67: #{_dft_impl.1} parent=31 // pred_check
          %p2568 = pneg %p129
        $region68: #{_dft_impl.1} parent=31 // pred_check_branch
          %2570 = sbr.rel (%p2568) target = $region70
        $region69: #{_dft_impl.1} parent=31 // pred_region
          %s2571 = smul.u32 2, %s17
          %s2572 = ssub.s32 3, %s2571
          %p2573 = scmp.lt.s32.totalorder %s2572, 2
          %s2574 = scalar_select %p2573, %s2572, 2
          %s2575 = smul.u32 128, %s2574
          %s2576 = smul.u32 %s2575, 5
          %p2577 = scmp.ne.s32.totalorder 0, %s2576
          %s2578 = smul.addr %s2571, 5
          %s2579 = smul.addr %s2578, 8
          %s2580 = scalar_lea.vmem %s4, %s2579
          // Predicated region
          $region71: #{_dft_impl.1} parent=69 // pred_check
            %p2581 = pneg %p2577
          $region72: #{_dft_impl.1} parent=69 // pred_check_branch
            %2583 = sbr.rel (%p2581) target = $region74
          $region73: #{_dft_impl.1} parent=69 // pred_region
            // Predicated region
            $region75: #{_dft_impl.1} parent=73 // pred_check
              _
            $region76: #{_dft_impl.1} parent=73 // pred_check_branch
              %2585 = sbr.rel (0) target = $region78
            $region77: #{_dft_impl.1} parent=73 // pred_region
              %s2586 = sshrl.u32 %s2574, 1
              // While loop
              $region79: #{_dft_impl.1} parent=77 // loop_pre_header
                _
              $region80: #{_dft_impl.1} parent=77 // loop_header
                %s2588 = sphi 0, %s2590
                %p2589 = scmp.ge.s32.totalorder %s2588, %s2586
                %s2593 = sphi 0, %s2618
                %s2594 = sphi %s2476, %s2621
                %s2595 = sphi %s2580, %s2622
              $region81: #{_dft_impl.1} parent=77 // loop_header_branch
                %2592 = sbr.rel (%p2589) target = $region85
              $region82: #{_dft_impl.1} parent=77 // loop_body
                %v2596 = vld [vmem:[%s2594] sm:$0xff]
                %2597 = vst [vmem:[%s2595] sm:$0xff] %v2596
                %v2598 = vld [vmem:[%s2594 + $0x28] sm:$0xff]
                %2599 = vst [vmem:[%s2595 + $0x28] sm:$0xff] %v2598
                %v2600 = vld [vmem:[%s2594 + $0x8] sm:$0xff]
                %2601 = vst [vmem:[%s2595 + $0x8] sm:$0xff] %v2600
                %v2602 = vld [vmem:[%s2594 + $0x30] sm:$0xff]
                %2603 = vst [vmem:[%s2595 + $0x30] sm:$0xff] %v2602
                %v2604 = vld [vmem:[%s2594 + $0x10] sm:$0xff]
                %2605 = vst [vmem:[%s2595 + $0x10] sm:$0xff] %v2604
                %v2606 = vld [vmem:[%s2594 + $0x38] sm:$0xff]
                %2607 = vst [vmem:[%s2595 + $0x38] sm:$0xff] %v2606
                %v2608 = vld [vmem:[%s2594 + $0x18] sm:$0xff]
                %2609 = vst [vmem:[%s2595 + $0x18] sm:$0xff] %v2608
                %v2610 = vld [vmem:[%s2594 + $0x40] sm:$0xff]
                %2611 = vst [vmem:[%s2595 + $0x40] sm:$0xff] %v2610
                %v2612 = vld [vmem:[%s2594 + $0x20] sm:$0xff]
                %2613 = vst [vmem:[%s2595 + $0x20] sm:$0xff] %v2612
                %v2614 = vld [vmem:[%s2594 + $0x48] sm:$0xff]
                %2615 = vst [vmem:[%s2595 + $0x48] sm:$0xff] %v2614
                %s2616 = sadd.s32 1, %s2593
                %p2617 = scmp.ge.s32.totalorder %s2616, %s2586
                %s2618 = scalar_select %p2617, 0, %s2616
                %s2619 = smul.u32 %s2618, 80
                %s2620 = smul.u32 %s2618, 80
                %s2621 = scalar_lea.vmem %s2476, %s2619 [#allocation5]
                %s2622 = scalar_lea.vmem %s2580, %s2620
              $region83: #{_dft_impl.1} parent=77 // loop_footer
                %s2590 = sadd.s32 %s2588, 1
              $region84: #{_dft_impl.1} parent=77 // loop_footer_branch
                %2587 = sbr.rel target = $region80
              $region85: #{_dft_impl.1} parent=77 // loop_exit
                _
              %s2623 = sshrl.u32 %s2574, 1
              %s2624 = sand.u32 %s2574, 1
              %s2625 = smul.u32 %s2623, 2
              %s2626 = smul.u32 40, %s2625
              %s2627 = scalar_lea.vmem %s2476, %s2626 [#allocation5]
              %s2628 = smul.u32 40, %s2625
              %s2629 = scalar_lea.vmem %s2580, %s2628
              // While loop
              $region86: #{_dft_impl.1} parent=77 // loop_pre_header
                _
              $region87: #{_dft_impl.1} parent=77 // loop_header
                %s2631 = sphi 0, %s2633
                %p2632 = scmp.ge.s32.totalorder %s2631, %s2624
                %s2636 = sphi 0, %s2651
                %s2637 = sphi %s2627, %s2654
                %s2638 = sphi %s2629, %s2655
              $region88: #{_dft_impl.1} parent=77 // loop_header_branch
                %2635 = sbr.rel (%p2632) target = $region92
              $region89: #{_dft_impl.1} parent=77 // loop_body
                %v2639 = vld [vmem:[%s2637] sm:$0xff]
                %2640 = vst [vmem:[%s2638] sm:$0xff] %v2639
                %v2641 = vld [vmem:[%s2637 + $0x8] sm:$0xff]
                %2642 = vst [vmem:[%s2638 + $0x8] sm:$0xff] %v2641
                %v2643 = vld [vmem:[%s2637 + $0x10] sm:$0xff]
                %2644 = vst [vmem:[%s2638 + $0x10] sm:$0xff] %v2643
                %v2645 = vld [vmem:[%s2637 + $0x18] sm:$0xff]
                %2646 = vst [vmem:[%s2638 + $0x18] sm:$0xff] %v2645
                %v2647 = vld [vmem:[%s2637 + $0x20] sm:$0xff]
                %2648 = vst [vmem:[%s2638 + $0x20] sm:$0xff] %v2647
                %s2649 = sadd.s32 1, %s2636
                %p2650 = scmp.ge.s32.totalorder %s2649, %s2624
                %s2651 = scalar_select %p2650, 0, %s2649
                %s2652 = smul.u32 %s2651, 40
                %s2653 = smul.u32 %s2651, 40
                %s2654 = scalar_lea.vmem %s2627, %s2652 [#allocation5]
                %s2655 = scalar_lea.vmem %s2629, %s2653
              $region90: #{_dft_impl.1} parent=77 // loop_footer
                %s2633 = sadd.s32 %s2631, 1
              $region91: #{_dft_impl.1} parent=77 // loop_footer_branch
                %2630 = sbr.rel target = $region87
              $region92: #{_dft_impl.1} parent=77 // loop_exit
                _
            $region78: #{_dft_impl.1} parent=73 // pred_fallthru
              _
            // Predicated region
            $region93: #{_dft_impl.1} parent=73 // pred_check
              _
            $region94: #{_dft_impl.1} parent=73 // pred_check_branch
              %2657 = sbr.rel target = $region96
            $region95: #{_dft_impl.1} parent=73 // pred_region
              _
            $region96: #{_dft_impl.1} parent=73 // pred_fallthru
              _
          $region74: #{_dft_impl.1} parent=69 // pred_fallthru
            _
          %2658 = vnop
        $region70: #{_dft_impl.1} parent=31 // pred_fallthru
          _
      $region32: #{_dft_impl.1} parent=5 // pred_fallthru
        _
      %p2659 = scmp.le.s32.totalorder 2, %s12
      // Predicated region
      $region97: #{_dft_impl.1} parent=5 // pred_check
        %p2660 = pneg %p2659
      $region98: #{_dft_impl.1} parent=5 // pred_check_branch
        %2662 = sbr.rel (%p2660) target = $region100
      $region99: #{_dft_impl.1} parent=5 // pred_region
        %s2663 = ssub.s32 %s12, 2
        // Predicated region
        $region101: #{_dft_impl.1} parent=99 // pred_check
          %p2664 = pneg %p109
        $region102: #{_dft_impl.1} parent=99 // pred_check_branch
          %2666 = sbr.rel (%p2664) target = $region104
        $region103: #{_dft_impl.1} parent=99 // pred_region
          %s2667 = sand.u32 %s94, 1
          %s2668 = sand.u32 %s94, 1
          %s2669 = smul.addr %s2668, 80
          %s2670 = scalar_lea.vmem [#allocation4], %s2669
        $region104: #{_dft_impl.1} parent=99 // pred_fallthru
          _
        // Predicated region
        $region105: #{_dft_impl.1} parent=99 // pred_check
          %p2671 = pneg %p135
        $region106: #{_dft_impl.1} parent=99 // pred_check_branch
          %2673 = sbr.rel (%p2671) target = $region108
        $region107: #{_dft_impl.1} parent=99 // pred_region
          %s2674 = sand.u32 %s120, 1
          %s2675 = sand.u32 %s120, 1
          %s2676 = smul.addr %s2675, 80
          %s2677 = scalar_lea.vmem [#allocation5], %s2676
        $region108: #{_dft_impl.1} parent=99 // pred_fallthru
          _
      $region100: #{_dft_impl.1} parent=5 // pred_fallthru
        _
    $region6: #{_dft_impl.1} parent=1 // loop_footer
      %s16 = sadd.s32 1, %s12
    $region7: #{_dft_impl.1} parent=1 // loop_footer_branch
      %11 = sbr.rel target = $region3
    $region8: #{_dft_impl.1} parent=1 // loop_exit
      _
    %2678 = vsyncpa [#allocation3], 1
    %s2679 = scalar_lea.sflag [#allocation3], 1
    %2680 = vsyncpa %s2679, 1

</llo_original>
